<compile_context>
chip_gen: v6e
topology: v6e:2x2x1
jax: 0.10.0
libtpu: 0.0.40
codegen_flags: <defaults>
</compile_context>

<pallas_src>
import functools

import jax
import jax.numpy as jnp
from jax import lax
from jax.experimental import pallas as pl
from jax.experimental.pallas import tpu as pltpu

EPS = 1e-5


# --------------------------------------------------------------------------------------
# Small helpers
# --------------------------------------------------------------------------------------
def _vmem_limit_bytes():
    """Generation-aware VMEM budget: ~3/4 of physical (48 MiB on v7x, 96 MiB on v5e/v6e)."""
    try:
        info = pltpu.get_tpu_info()
        cap = int(getattr(info, "vmem_capacity_bytes", 0) or 0)
        if cap > 0:
            return min((cap * 3) // 4, 112 << 20)
    except Exception:
        pass
    return 48 << 20  # v7x-safe fallback


def _pick_tile_rows(H, W):
    """Smallest divisor TH of H such that the matmul M = TH*W >= ~512; else the whole image.

    Divisor-based so there is never a ragged tail; the per-tile working set stays near 512*9C.
    """
    for th in range(1, H + 1):
        if H % th == 0 and th * W >= 512:
            return th
    return H


# --------------------------------------------------------------------------------------
# In-kernel building blocks
# --------------------------------------------------------------------------------------
def _fill_shifted(xs_ref, img, *, H, W, C):
    """Fill the ((H+2)*W, 3C) VMEM scratch with the dw-pre-shifted, zero-padded image.

    xs[hp*W + w, dw*C + c] == padded_x[hp, w + dw, c], where padded_x is the (H+2, W+2, C)
    zero-padded image.  Built with 3 contiguous lane-block stores (instead of 9 per-tile
    copies); the w==0 / w==W-1 padding columns are handled with an iota mask.
    Halo rows are re-zeroed on EVERY grid step (required with megacore "parallel").
    """
    img = img.astype(xs_ref.dtype)
    zrow = jnp.zeros((W, 3 * C), xs_ref.dtype)
    xs_ref[0:W, :] = zrow                        # top halo row (hp = 0)
    xs_ref[(H + 1) * W:(H + 2) * W, :] = zrow    # bottom halo row (hp = H+1)

    col = lax.broadcasted_iota(jnp.int32, (H * W, 1), 0) % W
    zero1 = jnp.zeros((1, C), xs_ref.dtype)

    # dw = 0 tap: image shifted right by one column; w == 0 positions are padding.
    right = jnp.concatenate([zero1, img[:H * W - 1]], axis=0)
    xs_ref[W:(H + 1) * W, 0:C] = jnp.where(col == 0, jnp.zeros_like(right), right)
    # dw = 1 tap: the image itself.
    xs_ref[W:(H + 1) * W, C:2 * C] = img
    # dw = 2 tap: image shifted left by one column; w == W-1 positions are padding.
    left = jnp.concatenate([img[1:], zero1], axis=0)
    xs_ref[W:(H + 1) * W, 2 * C:3 * C] = jnp.where(col == W - 1, jnp.zeros_like(left), left)


def _conv3x3_and_stats(xs_ref, w_ref, out_ref, part_ref, *, TH, H, W, C):
    """3x3 conv (stride 1) from the pre-shifted buffer, TH output rows per loop step.

    Per row tile: 3 accumulating K=3C MXU matmuls (one per dh tap row) -- no im2col concat,
    no per-tile patch buffer.  Writes the raw (pre-BN) conv output (cast to out_ref.dtype)
    and per-image f32 [sum, sum_of_squares] partials for the BatchNorm batch statistics.
    """
    Cout = w_ref.shape[-1]
    n_tiles = H // TH
    M = TH * W

    def body(t, carry):
        s_acc, ss_acc = carry
        r0 = pl.multiple_of(t * M, M)
        acc = jnp.dot(xs_ref[pl.ds(pl.multiple_of(t * TH * W, W), M), :],
                      w_ref[0:3 * C, :], preferred_element_type=jnp.float32)
        for dh in (1, 2):
            p0 = pl.multiple_of((t * TH + dh) * W, W)
            acc = acc + jnp.dot(xs_ref[pl.ds(p0, M), :],
                                w_ref[dh * 3 * C:(dh + 1) * 3 * C, :],
                                preferred_element_type=jnp.float32)
        s_acc = s_acc + jnp.sum(acc, axis=0, keepdims=True)
        ss_acc = ss_acc + jnp.sum(acc * acc, axis=0, keepdims=True)
        out_ref[0, pl.ds(r0, M), :] = acc.astype(out_ref.dtype)
        return s_acc, ss_acc

    zero = jnp.zeros((1, Cout), jnp.float32)
    s, ss = lax.fori_loop(0, n_tiles, body, (zero, zero), unroll=(n_tiles <= 8))
    part_ref[0] = jnp.concatenate([s, ss], axis=0)


# --------------------------------------------------------------------------------------
# Kernels
# --------------------------------------------------------------------------------------
def _conv1_kernel(x_ref, w_ref, out_ref, part_ref, xs_ref, *, TH, H, W, C):
    """Per image: NCHW block -> channels-on-lanes via one 2-D VMEM transpose, pad + dw-shift
    in VMEM (no wrapper jnp.pad / transpose), conv1, emit raw output + BN1 partial stats."""
    img = jnp.transpose(x_ref[0], (1, 0))          # (C, H*W) -> (H*W, C), f32, XLU transpose
    _fill_shifted(xs_ref, img, H=H, W=W, C=C)
    _conv3x3_and_stats(xs_ref, w_ref, out_ref, part_ref, TH=TH, H=H, W=W, C=C)


def _bn1_relu_conv2_kernel(y1_ref, scale_ref, shift_ref, w_ref, out_ref, part_ref, xs_ref,
                           *, TH, H, W, C):
    """Per image: z1 = relu(bn1(conv1_raw)) built directly in VMEM (never hits HBM),
    dw-pre-shifted in VMEM, then conv2 + BN2 partial stats."""
    z = jnp.maximum(y1_ref[0].astype(jnp.float32) * scale_ref[...] + shift_ref[...], 0.0)
    _fill_shifted(xs_ref, z, H=H, W=W, C=C)
    _conv3x3_and_stats(xs_ref, w_ref, out_ref, part_ref, TH=TH, H=H, W=W, C=C)


def _bn2_add_relu_kernel(y2_ref, scale_ref, shift_ref, x_ref, out_ref):
    """Per image: out = relu(bn2(conv2_raw) + identity), stored back in NCHW layout
    (lane-dense (C, H*W) store) via one in-VMEM 2-D transpose."""
    y = y2_ref[0].astype(jnp.float32) * scale_ref[...] + shift_ref[...]    # (H*W, C) f32
    out_ref[0] = jnp.maximum(jnp.transpose(y, (1, 0)) + x_ref[0], 0.0)     # (C, H*W)


# --------------------------------------------------------------------------------------
# Wrapper
# --------------------------------------------------------------------------------------
def plain_block_forward(x_nchw, w1_oihw, g1, b1, w2_oihw, g2, b2, *,
                        compute_dtype=jnp.bfloat16):
    """PlainBlock forward (stride=1, down_sample=None). x_nchw: (N, C, H, W) float32."""
    N, C, H, W = x_nchw.shape
    assert w1_oihw.shape == (C, C, 3, 3) and w2_oihw.shape == (C, C, 3, 3), (
        "residual path requires in_channels == out_channels, 3x3 kernels")

    TH = _pick_tile_rows(H, W)
    store_dtype = compute_dtype          # bf16 intermediates halve the y1/y2 HBM round trips

    x_flat = x_nchw.astype(jnp.float32).reshape(N, C, H * W)   # free reshape, NO transpose

    def repack(w_oihw):
        # OIHW -> (kh, kw, Cin, Cout) -> (9*Cin, Cout); rows ordered (dh, dw, cin) to match
        # the dh-slab x (dw, cin)-lane layout of the pre-shifted buffer.
        return jnp.transpose(w_oihw.astype(jnp.float32), (2, 3, 1, 0)).reshape(9 * C, C) \
                  .astype(compute_dtype)

    w1 = repack(w1_oihw)
    w2 = repack(w2_oihw)

    cparams = pltpu.CompilerParams(
        dimension_semantics=("parallel",),          # batch axis -> both TCs on v7x megacore
        vmem_limit_bytes=_vmem_limit_bytes())

    nchw_spec = pl.BlockSpec((1, C, H * W), lambda n: (n, 0, 0))   # NCHW-flat image block
    act_spec = pl.BlockSpec((1, H * W, C), lambda n: (n, 0, 0))    # channels-minor activations
    vec_spec = pl.BlockSpec((1, C), lambda n: (0, 0))
    w_spec = pl.BlockSpec((9 * C, C), lambda n: (0, 0))
    part_spec = pl.BlockSpec((1, 2, C), lambda n: (n, 0, 0))

    conv_out_shapes = (jax.ShapeDtypeStruct((N, H * W, C), store_dtype),
                       jax.ShapeDtypeStruct((N, 2, C), jnp.float32))
    xs_scratch = pltpu.VMEM(((H + 2) * W, 3 * C), compute_dtype)

    ebytes = jnp.dtype(store_dtype).itemsize
    conv_flops = 2 * N * H * W * 9 * C * C
    conv1_cost = pl.CostEstimate(
        flops=conv_flops, transcendentals=0,
        bytes_accessed=int(N * C * H * W * 4 + 9 * C * C * ebytes
                           + N * H * W * C * ebytes + N * 2 * C * 4))
    conv2_cost = pl.CostEstimate(
        flops=conv_flops, transcendentals=0,
        bytes_accessed=int(2 * N * H * W * C * ebytes + 9 * C * C * ebytes
                           + N * 2 * C * 4 + 4 * C * 4))
    fin_cost = pl.CostEstimate(
        flops=4 * N * H * W * C, transcendentals=0,
        bytes_accessed=int(N * H * W * C * ebytes + 2 * N * C * H * W * 4 + 4 * C * 4))

    # ---- stage 1, pass 1: conv1 + per-image partial BN1 stats ---------------------------
    y1_raw, part1 = pl.pallas_call(
        functools.partial(_conv1_kernel, TH=TH, H=H, W=W, C=C),
        out_shape=conv_out_shapes,
        grid_spec=pltpu.PrefetchScalarGridSpec(
            num_scalar_prefetch=0, grid=(N,),
            in_specs=[nchw_spec, w_spec],
            out_specs=(act_spec, part_spec),
            scratch_shapes=[xs_scratch]),
        compiler_params=cparams,
        cost_estimate=conv1_cost,
    )(x_flat, w1)

    def bn_affine(part, gamma, beta):
        # Fold training-mode BN (batch stats, biased var) into a per-channel scale/shift.
        cnt = jnp.float32(N * H * W)
        tot = part.sum(axis=0)                       # (2, C)
        mean = tot[0] / cnt
        var = jnp.maximum(tot[1] / cnt - mean * mean, 0.0)
        scale = gamma.astype(jnp.float32) * lax.rsqrt(var + EPS)
        shift = beta.astype(jnp.float32) - mean * scale
        return scale.reshape(1, C), shift.reshape(1, C)

    scale1, shift1 = bn_affine(part1, g1, b1)

    # ---- stage 1 pass 2 fused with stage 2 pass 1: bn1+relu -> conv2 (+ BN2 partials) ---
    y2_raw, part2 = pl.pallas_call(
        functools.partial(_bn1_relu_conv2_kernel, TH=TH, H=H, W=W, C=C),
        out_shape=conv_out_shapes,
        grid_spec=pltpu.PrefetchScalarGridSpec(
            num_scalar_prefetch=0, grid=(N,),
            in_specs=[act_spec, vec_spec, vec_spec, w_spec],
            out_specs=(act_spec, part_spec),
            scratch_shapes=[xs_scratch]),
        compiler_params=cparams,
        cost_estimate=conv2_cost,
    )(y1_raw, scale1, shift1, w2)

    scale2, shift2 = bn_affine(part2, g2, b2)

    # ---- stage 2, pass 2: bn2 + residual add + relu, stored directly as NCHW ------------
    out_flat = pl.pallas_call(
        _bn2_add_relu_kernel,
        out_shape=jax.ShapeDtypeStruct((N, C, H * W), jnp.float32),
        grid_spec=pltpu.PrefetchScalarGridSpec(
            num_scalar_prefetch=0, grid=(N,),
            in_specs=[act_spec, vec_spec, vec_spec, nchw_spec],
            out_specs=nchw_spec),
        compiler_params=cparams,
        cost_estimate=fin_cost,
    )(y2_raw, scale2, shift2, x_flat)

    return out_flat.reshape(N, C, H, W)              # free reshape, already NCHW


# --------------------------------------------------------------------------------------
# Pure-JAX reference (mirrors the PyTorch forward with training-mode BN)
# --------------------------------------------------------------------------------------
def plain_block_reference(x, w1, g1, b1, w2, g2, b2):
    def conv(y, w):
        return jax.lax.conv_general_dilated(
            y, w, window_strides=(1, 1), padding=((1, 1), (1, 1)),
            dimension_numbers=("NCHW", "OIHW", "NCHW"))

    def bn(y, g, b):
        mean = y.mean(axis=(0, 2, 3), keepdims=True)
        var = ((y - mean) ** 2).mean(axis=(0, 2, 3), keepdims=True)
        return (y - mean) * jax.lax.rsqrt(var + EPS) * g.reshape(1, -1, 1, 1) + b.reshape(1, -1, 1, 1)

    identity = x
    y = jnp.maximum(bn(conv(x, w1), g1, b1), 0.0)
    y = bn(conv(y, w2), g2, b2)
    y = y + identity
    return jnp.maximum(y, 0.0)


if __name__ == "__main__":
    # Small shapes consistent with the module: in_channels == out_channels, stride=1.
    Nb, Cch, Hs, Ws = 2, 4, 16, 16

    key = jax.random.PRNGKey(0)
    kx, kw1, kw2 = jax.random.split(key, 3)

    x = jax.random.normal(kx, (Nb, Cch, Hs, Ws), dtype=jnp.float32)
    w1 = jax.random.normal(kw1, (Cch, Cch, 3, 3), dtype=jnp.float32) * 0.1
    w2 = jax.random.normal(kw2, (Cch, Cch, 3, 3), dtype=jnp.float32) * 0.1
    # BatchNorm2d default init: weight=1, bias=0.
    g1 = jnp.ones((Cch,), jnp.float32)
    b1 = jnp.zeros((Cch,), jnp.float32)
    g2 = jnp.ones((Cch,), jnp.float32)
    b2 = jnp.zeros((Cch,), jnp.float32)

    ref = jax.block_until_ready(plain_block_reference(x, w1, g1, b1, w2, g2, b2))

    # Exact path: f32 MXU operands / f32 intermediates, tight tolerance.
    out_f32 = jax.block_until_ready(
        plain_block_forward(x, w1, g1, b1, w2, g2, b2, compute_dtype=jnp.float32))
    assert out_f32.shape == (Nb, Cch, Hs, Ws)
    assert jnp.allclose(out_f32, ref, atol=2e-4, rtol=2e-4), \
        float(jnp.max(jnp.abs(out_f32 - ref)))

    # Production path (v6e/v7x): bf16 MXU operands + bf16 intermediates, f32 stats/accum.
    out_bf16 = jax.block_until_ready(
        plain_block_forward(x, w1, g1, b1, w2, g2, b2, compute_dtype=jnp.bfloat16))
    assert out_bf16.shape == (Nb, Cch, Hs, Ws)
    assert jnp.allclose(out_bf16, ref, atol=5e-2, rtol=5e-2), \
        float(jnp.max(jnp.abs(out_bf16 - ref)))

    print("KERNEL_OK")
</pallas_src>

<mosaic_0001>
module attributes {stable_mosaic.version = 11 : i64} {
  func.func @_conv1_kernel(%arg0: i32, %arg1: memref<1x4x256xf32, #tpu.memory_space<vmem>>, %arg2: memref<36x4xf32, #tpu.memory_space<vmem>>, %arg3: memref<1x256x4xf32, #tpu.memory_space<vmem>>, %arg4: memref<1x2x4xf32, #tpu.memory_space<vmem>>, %arg5: memref<288x12xf32, #tpu.memory_space<vmem>>) attributes {dimension_semantics = [#tpu.dimension_semantics<parallel>], iteration_bounds = array<i64: 2>, scalar_prefetch = 0 : i64, scratch_operands = 1 : i64, tpu.core_type = #tpu.core_type<tc>, window_params = [{transform_indices = @transform_0, window_bounds = array<i64: 1, 4, 256>}, {pipeline_mode = #tpu.pipeline_mode<synchronous>, transform_indices = @transform_1, window_bounds = array<i64: 36, 4>}, {transform_indices = @transform_2, window_bounds = array<i64: 1, 256, 4>}, {transform_indices = @transform_3, window_bounds = array<i64: 1, 2, 4>}]} {
    %c0 = arith.constant 0 : index
    %c0_0 = arith.constant 0 : index
    %c0_1 = arith.constant 0 : index
    %0 = vector.load %arg1[%c0, %c0_0, %c0_1] : memref<1x4x256xf32, #tpu.memory_space<vmem>>, vector<1x4x256xf32>
    %1 = vector.shape_cast %0 : vector<1x4x256xf32> to vector<4x256xf32>
    %2 = tpu.transpose %1, [1, 0] : vector<4x256xf32> -> vector<256x4xf32>
    %cst = arith.constant 0.000000e+00 : f32
    %3 = vector.broadcast %cst : f32 to vector<16x12xf32>
    %c0_2 = arith.constant 0 : index
    %c0_3 = arith.constant 0 : index
    %4 = vector.load %arg5[%c0_2, %c0_3] : memref<288x12xf32, #tpu.memory_space<vmem>>, vector<16x12xf32>
    tpu.vector_store %arg5[%c0_2, %c0_3], %3 {strides = array<i32>} : memref<288x12xf32, #tpu.memory_space<vmem>>, vector<16x12xf32>,
    %c272 = arith.constant 272 : index
    %c0_4 = arith.constant 0 : index
    %5 = vector.load %arg5[%c272, %c0_4] : memref<288x12xf32, #tpu.memory_space<vmem>>, vector<16x12xf32>
    tpu.vector_store %arg5[%c272, %c0_4], %3 {strides = array<i32>} : memref<288x12xf32, #tpu.memory_space<vmem>>, vector<16x12xf32>,
    %6 = tpu.iota {dimensions = array<i32: 0>} : vector<256x1xi32>
    %c16_i32 = arith.constant 16 : i32
    %c0_i32 = arith.constant 0 : i32
    %7 = arith.cmpi eq, %c16_i32, %c0_i32 : i32
    %c1_i32 = arith.constant 1 : i32
    %8 = arith.select %7, %c1_i32, %c16_i32 : i32
    %9 = vector.broadcast %8 : i32 to vector<256x1xi32>
    %10 = arith.remsi %6, %9 : vector<256x1xi32>
    %c0_i32_5 = arith.constant 0 : i32
    %11 = vector.broadcast %c0_i32_5 : i32 to vector<256x1xi32>
    %12 = arith.cmpi ne, %10, %11 : vector<256x1xi32>
    %c0_i32_6 = arith.constant 0 : i32
    %13 = vector.broadcast %c0_i32_6 : i32 to vector<256x1xi32>
    %14 = arith.cmpi slt, %10, %13 : vector<256x1xi32>
    %c0_i32_7 = arith.constant 0 : i32
    %15 = arith.cmpi slt, %8, %c0_i32_7 : i32
    %16 = vector.broadcast %15 : i1 to vector<256x1xi1>
    %17 = vector.broadcast %16 : vector<256x1xi1> to vector<256x1xi1>
    %18 = arith.xori %14, %17 : vector<256x1xi1>
    %19 = arith.andi %18, %12 : vector<256x1xi1>
    %20 = vector.broadcast %8 : i32 to vector<256x1xi32>
    %21 = arith.addi %10, %20 : vector<256x1xi32>
    %22 = arith.select %19, %21, %10 : vector<256x1xi1>, vector<256x1xi32>
    %cst_8 = arith.constant 0.000000e+00 : f32
    %23 = vector.broadcast %cst_8 : f32 to vector<1x4xf32>
    %24 = vector.extract_strided_slice %2 {offsets = [0, 0], sizes = [255, 4], strides = [1, 1]} : vector<256x4xf32> to vector<255x4xf32>
    %25 = tpu.concatenate %23, %24 in 0 : vector<1x4xf32>, vector<255x4xf32> -> vector<256x4xf32>
    %c0_i32_9 = arith.constant 0 : i32
    %26 = vector.broadcast %c0_i32_9 : i32 to vector<256x1xi32>
    %27 = arith.cmpi eq, %22, %26 : vector<256x1xi32>
    %cst_10 = arith.constant 0.000000e+00 : f32
    %28 = vector.broadcast %cst_10 : f32 to vector<256x4xf32>
    %29 = vector.shape_cast %27 : vector<256x1xi1> to vector<256x1xi1>
    %30 = vector.broadcast %29 : vector<256x1xi1> to vector<256x4xi1>
    %31 = arith.select %30, %28, %25 : vector<256x4xi1>, vector<256x4xf32>
    %c16 = arith.constant 16 : index
    %c0_11 = arith.constant 0 : index
    %32 = vector.load %arg5[%c16, %c0_11] : memref<288x12xf32, #tpu.memory_space<vmem>>, vector<256x4xf32>
    tpu.vector_store %arg5[%c16, %c0_11], %31 {strides = array<i32>} : memref<288x12xf32, #tpu.memory_space<vmem>>, vector<256x4xf32>,
    %c16_12 = arith.constant 16 : index
    %c4 = arith.constant 4 : index
    %33 = vector.load %arg5[%c16_12, %c4] : memref<288x12xf32, #tpu.memory_space<vmem>>, vector<256x4xf32>
    tpu.vector_store %arg5[%c16_12, %c4], %2 {strides = array<i32>} : memref<288x12xf32, #tpu.memory_space<vmem>>, vector<256x4xf32>,
    %34 = vector.extract_strided_slice %2 {offsets = [1, 0], sizes = [255, 4], strides = [1, 1]} : vector<256x4xf32> to vector<255x4xf32>
    %35 = tpu.concatenate %34, %23 in 0 : vector<255x4xf32>, vector<1x4xf32> -> vector<256x4xf32>
    %c15_i32 = arith.constant 15 : i32
    %36 = vector.broadcast %c15_i32 : i32 to vector<256x1xi32>
    %37 = arith.cmpi eq, %22, %36 : vector<256x1xi32>
    %cst_13 = arith.constant 0.000000e+00 : f32
    %38 = vector.broadcast %cst_13 : f32 to vector<256x4xf32>
    %39 = vector.shape_cast %37 : vector<256x1xi1> to vector<256x1xi1>
    %40 = vector.broadcast %39 : vector<256x1xi1> to vector<256x4xi1>
    %41 = arith.select %40, %38, %35 : vector<256x4xi1>, vector<256x4xf32>
    %c16_14 = arith.constant 16 : index
    %c8 = arith.constant 8 : index
    %42 = vector.load %arg5[%c16_14, %c8] : memref<288x12xf32, #tpu.memory_space<vmem>>, vector<256x4xf32>
    tpu.vector_store %arg5[%c16_14, %c8], %41 {strides = array<i32>} : memref<288x12xf32, #tpu.memory_space<vmem>>, vector<256x4xf32>,
    %cst_15 = arith.constant 0.000000e+00 : f32
    %43 = vector.broadcast %cst_15 : f32 to vector<1x4xf32>
    %c0_i32_16 = arith.constant 0 : i32
    %c256_i32 = arith.constant 256 : i32
    %44 = arith.muli %c0_i32_16, %c256_i32 : i32
    %45 = tpu.assume_multiple %44, 256 : i32
    %c16_i32_17 = arith.constant 16 : i32
    %46 = arith.muli %c0_i32_16, %c16_i32_17 : i32
    %c16_i32_18 = arith.constant 16 : i32
    %47 = arith.muli %46, %c16_i32_18 : i32
    %48 = tpu.assume_multiple %47, 16 : i32
    %49 = arith.index_cast %48 : i32 to index
    %c0_19 = arith.constant 0 : index
    %50 = vector.load %arg5[%49, %c0_19] : memref<288x12xf32, #tpu.memory_space<vmem>>, vector<256x12xf32>
    %c0_20 = arith.constant 0 : index
    %c0_21 = arith.constant 0 : index
    %51 = vector.load %arg2[%c0_20, %c0_21] : memref<36x4xf32, #tpu.memory_space<vmem>>, vector<12x4xf32>
    %cst_22 = arith.constant dense<0.000000e+00> : vector<256x4xf32>
    %52 = tpu.matmul %50, %51, %cst_22 {dimension_numbers = #tpu.dot_dimension_numbers<[1], [0], [0], [1], [0, 0, 1, 1], [], []>} : vector<256x12xf32>, vector<12x4xf32>, vector<256x4xf32> -> vector<256x4xf32>
    %c16_i32_23 = arith.constant 16 : i32
    %53 = arith.muli %c0_i32_16, %c16_i32_23 : i32
    %c1_i32_24 = arith.constant 1 : i32
    %54 = arith.addi %53, %c1_i32_24 : i32
    %c16_i32_25 = arith.constant 16 : i32
    %55 = arith.muli %54, %c16_i32_25 : i32
    %56 = tpu.assume_multiple %55, 16 : i32
    %57 = arith.index_cast %56 : i32 to index
    %c0_26 = arith.constant 0 : index
    %58 = vector.load %arg5[%57, %c0_26] : memref<288x12xf32, #tpu.memory_space<vmem>>, vector<256x12xf32>
    %c12 = arith.constant 12 : index
    %c0_27 = arith.constant 0 : index
    %59 = vector.load %arg2[%c12, %c0_27] : memref<36x4xf32, #tpu.memory_space<vmem>>, vector<12x4xf32>
    %cst_28 = arith.constant dense<0.000000e+00> : vector<256x4xf32>
    %60 = tpu.matmul %58, %59, %cst_28 {dimension_numbers = #tpu.dot_dimension_numbers<[1], [0], [0], [1], [0, 0, 1, 1], [], []>} : vector<256x12xf32>, vector<12x4xf32>, vector<256x4xf32> -> vector<256x4xf32>
    %61 = arith.addf %52, %60 : vector<256x4xf32>
    %c16_i32_29 = arith.constant 16 : i32
    %62 = arith.muli %c0_i32_16, %c16_i32_29 : i32
    %c2_i32 = arith.constant 2 : i32
    %63 = arith.addi %62, %c2_i32 : i32
    %c16_i32_30 = arith.constant 16 : i32
    %64 = arith.muli %63, %c16_i32_30 : i32
    %65 = tpu.assume_multiple %64, 16 : i32
    %66 = arith.index_cast %65 : i32 to index
    %c0_31 = arith.constant 0 : index
    %67 = vector.load %arg5[%66, %c0_31] : memref<288x12xf32, #tpu.memory_space<vmem>>, vector<256x12xf32>
    %c24 = arith.constant 24 : index
    %c0_32 = arith.constant 0 : index
    %68 = vector.load %arg2[%c24, %c0_32] : memref<36x4xf32, #tpu.memory_space<vmem>>, vector<12x4xf32>
    %cst_33 = arith.constant dense<0.000000e+00> : vector<256x4xf32>
    %69 = tpu.matmul %67, %68, %cst_33 {dimension_numbers = #tpu.dot_dimension_numbers<[1], [0], [0], [1], [0, 0, 1, 1], [], []>} : vector<256x12xf32>, vector<12x4xf32>, vector<256x4xf32> -> vector<256x4xf32>
    %70 = arith.addf %61, %69 : vector<256x4xf32>
    %cst_34 = arith.constant dense<0.000000e+00> : vector<4xf32>
    %71 = vector.multi_reduction <add>, %70, %cst_34 [0] : vector<256x4xf32> to vector<4xf32>
    %72 = vector.shape_cast %71 : vector<4xf32> to vector<1x4xf32>
    %73 = arith.addf %43, %72 : vector<1x4xf32>
    %74 = arith.mulf %70, %70 : vector<256x4xf32>
    %cst_35 = arith.constant dense<0.000000e+00> : vector<4xf32>
    %75 = vector.multi_reduction <add>, %74, %cst_35 [0] : vector<256x4xf32> to vector<4xf32>
    %76 = vector.shape_cast %75 : vector<4xf32> to vector<1x4xf32>
    %77 = arith.addf %43, %76 : vector<1x4xf32>
    %c0_36 = arith.constant 0 : index
    %78 = arith.index_cast %45 : i32 to index
    %c0_37 = arith.constant 0 : index
    %79 = vector.load %arg3[%c0_36, %78, %c0_37] : memref<1x256x4xf32, #tpu.memory_space<vmem>>, vector<1x256x4xf32>
    %80 = vector.shape_cast %79 : vector<1x256x4xf32> to vector<256x4xf32>
    %81 = vector.shape_cast %70 : vector<256x4xf32> to vector<1x256x4xf32>
    tpu.vector_store %arg3[%c0_36, %78, %c0_37], %81 {strides = array<i32>} : memref<1x256x4xf32, #tpu.memory_space<vmem>>, vector<1x256x4xf32>,
    %c1_i32_38 = arith.constant 1 : i32
    %82 = tpu.concatenate %73, %77 in 0 : vector<1x4xf32>, vector<1x4xf32> -> vector<2x4xf32>
    %c0_39 = arith.constant 0 : index
    %c0_40 = arith.constant 0 : index
    %c0_41 = arith.constant 0 : index
    %83 = vector.load %arg4[%c0_39, %c0_40, %c0_41] : memref<1x2x4xf32, #tpu.memory_space<vmem>>, vector<1x2x4xf32>
    %84 = vector.shape_cast %83 : vector<1x2x4xf32> to vector<2x4xf32>
    %85 = vector.shape_cast %82 : vector<2x4xf32> to vector<1x2x4xf32>
    tpu.vector_store %arg4[%c0_39, %c0_40, %c0_41], %85 {strides = array<i32>} : memref<1x2x4xf32, #tpu.memory_space<vmem>>, vector<1x2x4xf32>,
    return
  }
  func.func @transform_0(%arg0: i32) -> (i32, i32, i32) {
    %c0_i32 = arith.constant 0 : i32
    %c0_i32_0 = arith.constant 0 : i32
    %c0_i32_1 = arith.constant 0 : i32
    return %arg0, %c0_i32, %c0_i32_0 : i32, i32, i32
  }
  func.func @transform_1(%arg0: i32) -> (i32, i32) {
    %c0_i32 = arith.constant 0 : i32
    %c0_i32_0 = arith.constant 0 : i32
    %c0_i32_1 = arith.constant 0 : i32
    return %c0_i32, %c0_i32_0 : i32, i32
  }
  func.func @transform_2(%arg0: i32) -> (i32, i32, i32) {
    %c0_i32 = arith.constant 0 : i32
    %c0_i32_0 = arith.constant 0 : i32
    %c0_i32_1 = arith.constant 0 : i32
    return %arg0, %c0_i32, %c0_i32_0 : i32, i32, i32
  }
  func.func @transform_3(%arg0: i32) -> (i32, i32, i32) {
    %c0_i32 = arith.constant 0 : i32
    %c0_i32_0 = arith.constant 0 : i32
    %c0_i32_1 = arith.constant 0 : i32
    return %arg0, %c0_i32, %c0_i32_0 : i32, i32, i32
  }
}

</mosaic_0001>

<llo_original>
// kernel: tpu_custom_call.1
$region0: #{tpu_custom_call.1}
  #allocation0 [shape = 'u32[]', space=smem, size = 0x4, offset = 0x4, fixed_abs, tag = 'smem constant byte address 0x4 - core index']
  #allocation1 [shape = 'u32[144,128]{1,0:T(1,128)}', space=vmem, size = 0x12000, scoped, tag = 'internal scratch']
  #allocation2 [shape = 'f32[288,12]{1,0:T(8,128)}', space=vmem, size = 0x24000, scoped, tag = 'scratch operand']
  %s0 = inlined_call_operand.vmem [shape: f32[2,4,256], index: 0, kind: input, shape index: {}]
  %s1 = inlined_call_operand.vmem [shape: f32[36,4], index: 1, kind: input, shape index: {}]
  %s2 = inlined_call_operand.vmem [shape: f32[2,256,4], index: 2, kind: output, shape index: {0}]
  %s3 = inlined_call_operand.hbm [shape: f32[2,2,4], index: 3, kind: output, shape index: {1}]
  %4 = xla_tuple %s2, %s3
  %s5 = sld [smem:[#allocation0]]
  $region49: #{tpu_custom_call.1} parent=0
    _
  %s7 = ssub.s32 1, %s5
  %s8 = scalar_select 0, %s7, %s5
  $region1: #{tpu_custom_call.1} parent=0
    #allocation3 [shape = 'u8[2048]{0}', space=vmem, size = 0x800, scoped, tag = 'output window, operand 1']
    #allocation4 [shape = 's32[2]{0}', space=sflag, size = 0x8, scoped, tag = 'scoped memory for tpu_custom_call.1']
    %9 = vsyncpa [#allocation4], 0
    %s10 = scalar_lea.sflag [#allocation4], 1
    %11 = vsyncpa %s10, 0
    loop: start=0, step=1, limit=4
    $region2: #{tpu_custom_call.1} parent=1 // loop_pre_header
      _
    $region3: #{tpu_custom_call.1} parent=1 // loop_header
      %s13 = sphi 0, %s17
      %p14 = scmp.ge.s32.totalorder %s13, 4
      %s23 = sphi 0, %s25
      %s26 = sphi 0, %s23
      %s27 = sphi 0, %s26
      %s43 = sphi 0, %s27
      %s47 = sphi 0, %s47
      %s49 = sphi 0, %s47
      %s50 = sphi 0, %s49
      %s64 = sphi 0, %s50
      %s70 = sphi 0, %s72
      %s73 = sphi 0, %s70
      %s74 = sphi 0, %s73
      %s90 = sphi 0, %s74
      %s96 = sphi 0, %s98
      %s99 = sphi 0, %s96
      %s100 = sphi 0, %s99
      %s116 = sphi 0, %s100
    $region4: #{tpu_custom_call.1} parent=1 // loop_header_branch
      %16 = sbr.rel (%p14) target = $region8
    $region5: #{tpu_custom_call.1} parent=1 // loop_body
      %s18 = ssub.s32 %s13, 1
      %s19 = ssub.s32 %s13, 2
      %s20 = sadd.s32 %s13, 1
      %s21 = ssub.s32 %s13, %s20
      %p22 = scmp.eq.s32.totalorder %s21, 0
      %s24 = sadd.s32 %s23, 1
      %s25 = scalar_select %p22, %s23, %s24
      %p28 = pneg %p22
      %p29 = scmp.eq.s32.totalorder %s13, 1
      %p30 = por %p28, %p29
      %p31 = scmp.ne.s32.totalorder %s23, %s26
      %p32 = scmp.eq.s32.totalorder %s13, 0
      %p33 = por %p31, %p32
      %p34 = scmp.ne.s32.totalorder %s23, %s26
      %p35 = scmp.eq.s32.totalorder %s18, 1
      %p36 = por %p34, %p35
      %p37 = scmp.ne.s32.totalorder %s26, %s27
      %p38 = scmp.eq.s32.totalorder %s18, 0
      %p39 = por %p37, %p38
      %p40 = scmp.ne.s32.totalorder %s26, %s27
      %p41 = scmp.eq.s32.totalorder %s19, 1
      %p42 = por %p40, %p41
      %p44 = scmp.ne.s32.totalorder %s27, %s43
      %p45 = scmp.eq.s32.totalorder %s19, 0
      %p46 = por %p44, %p45
      %s48 = sadd.s32 %s47, 1
      %p51 = scmp.eq.s32.totalorder %s13, 1
      %p52 = scmp.ne.s32.totalorder %s47, %s49
      %p53 = scmp.eq.s32.totalorder %s13, 0
      %p54 = por %p52, %p53
      %p55 = scmp.ne.s32.totalorder %s47, %s49
      %p56 = scmp.eq.s32.totalorder %s18, 1
      %p57 = por %p55, %p56
      %p58 = scmp.ne.s32.totalorder %s49, %s50
      %p59 = scmp.eq.s32.totalorder %s18, 0
      %p60 = por %p58, %p59
      %p61 = scmp.ne.s32.totalorder %s49, %s50
      %p62 = scmp.eq.s32.totalorder %s19, 1
      %p63 = por %p61, %p62
      %p65 = scmp.ne.s32.totalorder %s50, %s64
      %p66 = scmp.eq.s32.totalorder %s19, 0
      %p67 = por %p65, %p66
      %s68 = ssub.s32 %s13, %s20
      %p69 = scmp.eq.s32.totalorder %s68, 0
      %s71 = sadd.s32 %s70, 1
      %s72 = scalar_select %p69, %s70, %s71
      %p75 = pneg %p69
      %p76 = scmp.eq.s32.totalorder %s13, 1
      %p77 = por %p75, %p76
      %p78 = scmp.ne.s32.totalorder %s70, %s73
      %p79 = scmp.eq.s32.totalorder %s13, 0
      %p80 = por %p78, %p79
      %p81 = scmp.ne.s32.totalorder %s70, %s73
      %p82 = scmp.eq.s32.totalorder %s18, 1
      %p83 = por %p81, %p82
      %p84 = scmp.ne.s32.totalorder %s73, %s74
      %p85 = scmp.eq.s32.totalorder %s18, 0
      %p86 = por %p84, %p85
      %p87 = scmp.ne.s32.totalorder %s73, %s74
      %p88 = scmp.eq.s32.totalorder %s19, 1
      %p89 = por %p87, %p88
      %p91 = scmp.ne.s32.totalorder %s74, %s90
      %p92 = scmp.eq.s32.totalorder %s19, 0
      %p93 = por %p91, %p92
      %s94 = ssub.s32 %s13, %s20
      %p95 = scmp.eq.s32.totalorder %s94, 0
      %s97 = sadd.s32 %s96, 1
      %s98 = scalar_select %p95, %s96, %s97
      %p101 = pneg %p95
      %p102 = scmp.eq.s32.totalorder %s13, 1
      %p103 = por %p101, %p102
      %p104 = scmp.ne.s32.totalorder %s96, %s99
      %p105 = scmp.eq.s32.totalorder %s13, 0
      %p106 = por %p104, %p105
      %p107 = scmp.ne.s32.totalorder %s96, %s99
      %p108 = scmp.eq.s32.totalorder %s18, 1
      %p109 = por %p107, %p108
      %p110 = scmp.ne.s32.totalorder %s99, %s100
      %p111 = scmp.eq.s32.totalorder %s18, 0
      %p112 = por %p110, %p111
      %p113 = scmp.ne.s32.totalorder %s99, %s100
      %p114 = scmp.eq.s32.totalorder %s19, 1
      %p115 = por %p113, %p114
      %p117 = scmp.ne.s32.totalorder %s100, %s116
      %p118 = scmp.eq.s32.totalorder %s19, 0
      %p119 = por %p117, %p118
      %p120 = scmp.le.s32.totalorder 1, %s13
      %p121 = scmp.lt.s32.totalorder %s13, 3
      %p122 = pnand %p120, %p121
      %p123 = pneg %p122
      // Predicated region
      $region9: #{tpu_custom_call.1} parent=5 // pred_check
        _
      $region10: #{tpu_custom_call.1} parent=5 // pred_check_branch
        %125 = sbr.rel (%p122) target = $region12
      $region11: #{tpu_custom_call.1} parent=5 // pred_region
        %s126 = ssub.s32 %s13, 1
        // Predicated region
        $region13: #{tpu_custom_call.1} parent=11 // pred_check
          %p127 = pneg %p60
        $region14: #{tpu_custom_call.1} parent=11 // pred_check_branch
          %129 = sbr.rel (%p127) target = $region16
        $region15: #{tpu_custom_call.1} parent=11 // pred_region
          _
        $region16: #{tpu_custom_call.1} parent=11 // pred_fallthru
          _
      $region12: #{tpu_custom_call.1} parent=5 // pred_fallthru
        _
      %p130 = scmp.lt.s32.totalorder %s13, 2
      // Predicated region
      $region17: #{tpu_custom_call.1} parent=5 // pred_check
        %p131 = pneg %p130
      $region18: #{tpu_custom_call.1} parent=5 // pred_check_branch
        %133 = sbr.rel (%p131) target = $region20
      $region19: #{tpu_custom_call.1} parent=5 // pred_region
        // Predicated region
        $region21: #{tpu_custom_call.1} parent=19 // pred_check
          %p134 = pneg %p33
        $region22: #{tpu_custom_call.1} parent=19 // pred_check_branch
          %136 = sbr.rel (%p134) target = $region24
        $region23: #{tpu_custom_call.1} parent=19 // pred_region
          %p137 = scmp.lt.s32.totalorder %s13, 1
          %s138 = scalar_select %p137, %s13, 1
          %s139 = smul.addr %s138, 2
          %s140 = smul.addr %s139, 4
          %s141 = scalar_lea.vmem %s0, %s140
        $region24: #{tpu_custom_call.1} parent=19 // pred_fallthru
          _
      $region20: #{tpu_custom_call.1} parent=5 // pred_fallthru
        _
      %p142 = scmp.le.s32.totalorder 1, %s13
      %p143 = scmp.lt.s32.totalorder %s13, 3
      %p144 = pnand %p142, %p143
      %p145 = pneg %p144
      // Predicated region
      $region25: #{tpu_custom_call.1} parent=5 // pred_check
        _
      $region26: #{tpu_custom_call.1} parent=5 // pred_check_branch
        %147 = sbr.rel (%p144) target = $region28
      $region27: #{tpu_custom_call.1} parent=5 // pred_region
        %s148 = ssub.s32 %s13, 1
        %p149 = scmp.lt.s32.totalorder %s18, 1
        %s150 = scalar_select %p149, %s18, 1
        %s151 = smul.addr %s150, 2
        %s152 = smul.addr %s151, 4
        %s153 = scalar_lea.vmem %s0, %s152
        %p154 = pneg %p39
        %p155 = pneg %p36
        %p156 = pneg %p60
        %p157 = pneg %p57
        %p158 = pneg %p86
        %p159 = pneg %p83
        %p160 = scmp.lt.s32.totalorder %s18, 1
        %s161 = scalar_select %p160, %s18, 1
        %s162 = smul.addr %s161, 32
        %s163 = smul.addr %s162, 8
        %s164 = scalar_lea.vmem %s2, %s163
        %p165 = pneg %p112
        %p166 = pneg %p109
        %s167 = sand.u32 %s99, 1
        %s168 = scalar_lea.sflag [#allocation4], %s167
        %s169 = sand.u32 %s99, 1
        %s170 = smul.addr %s169, 2
        %s171 = scalar_lea.vmem [#allocation3], %s170
        %p172 = scmp.lt.s32.totalorder %s18, 1
        %s173 = scalar_select %p172, %s18, 1
        %s174 = smul.addr %s173, 2
        %s175 = smul.addr %s174, 4
        %s176 = scalar_lea.vmem %s0, %s175
        %p177 = scmp.lt.s32.totalorder %s18, 1
        %s178 = scalar_select %p177, %s18, 1
        %s179 = smul.addr %s178, 32
        %s180 = smul.addr %s179, 8
        %s181 = scalar_lea.vmem %s2, %s180
        %v182 = vld [vmem:[%s176] sm:$0xff]
        %v184 = vcombine.high %v182, %v182
        %186 = vxpose.xlu0.b32.start [1/16] %v182, 128
        %187 = vxpose.xlu0.b32.cont [2/16] 0.0, 128
        %188 = vxpose.xlu0.b32.cont [3/16] 0.0, 128
        %189 = vxpose.xlu0.b32.cont [4/16] 0.0, 128
        %190 = vxpose.xlu0.b32.cont [5/16] 0.0, 128
        %191 = vxpose.xlu0.b32.cont [6/16] 0.0, 128
        %192 = vxpose.xlu0.b32.cont [7/16] 0.0, 128
        %193 = vxpose.xlu0.b32.cont [8/16] 0.0, 128
        %194 = vxpose.xlu0.b32.cont [9/16] 0.0, 128
        %195 = vxpose.xlu0.b32.cont [10/16] 0.0, 128
        %196 = vxpose.xlu0.b32.cont [11/16] 0.0, 128
        %197 = vxpose.xlu0.b32.cont [12/16] 0.0, 128
        %198 = vxpose.xlu0.b32.cont [13/16] 0.0, 128
        %199 = vxpose.xlu0.b32.cont [14/16] 0.0, 128
        %200 = vxpose.xlu0.b32.cont [15/16] 0.0, 128
        %201 = vxpose.xlu0.b32.end [16/16] 0.0, 128
        %v202 = vpop.trf.xlu0
        %v203 = vpop.trf.xlu0
        %v204 = vpop.trf.xlu0
        %v205 = vpop.trf.xlu0
        %v206 = vpop.trf.xlu0
        %v207 = vpop.trf.xlu0
        %v208 = vpop.trf.xlu0
        %v209 = vpop.trf.xlu0
        %v210 = vpop.trf.xlu0
        %v211 = vpop.trf.xlu0
        %v212 = vpop.trf.xlu0
        %v213 = vpop.trf.xlu0
        %v214 = vpop.trf.xlu0
        %v215 = vpop.trf.xlu0
        %v216 = vpop.trf.xlu0
        %v217 = vpop.trf.xlu0
        %218 = vxpose.xlu0.b32.start [1/16] %v184, 128
        %219 = vxpose.xlu0.b32.cont [2/16] 0.0, 128
        %220 = vxpose.xlu0.b32.cont [3/16] 0.0, 128
        %221 = vxpose.xlu0.b32.cont [4/16] 0.0, 128
        %222 = vxpose.xlu0.b32.cont [5/16] 0.0, 128
        %223 = vxpose.xlu0.b32.cont [6/16] 0.0, 128
        %224 = vxpose.xlu0.b32.cont [7/16] 0.0, 128
        %225 = vxpose.xlu0.b32.cont [8/16] 0.0, 128
        %226 = vxpose.xlu0.b32.cont [9/16] 0.0, 128
        %227 = vxpose.xlu0.b32.cont [10/16] 0.0, 128
        %228 = vxpose.xlu0.b32.cont [11/16] 0.0, 128
        %229 = vxpose.xlu0.b32.cont [12/16] 0.0, 128
        %230 = vxpose.xlu0.b32.cont [13/16] 0.0, 128
        %231 = vxpose.xlu0.b32.cont [14/16] 0.0, 128
        %232 = vxpose.xlu0.b32.cont [15/16] 0.0, 128
        %233 = vxpose.xlu0.b32.end [16/16] 0.0, 128
        %v234 = vpop.trf.xlu0
        %v235 = vpop.trf.xlu0
        %v236 = vpop.trf.xlu0
        %v237 = vpop.trf.xlu0
        %v238 = vpop.trf.xlu0
        %v239 = vpop.trf.xlu0
        %v240 = vpop.trf.xlu0
        %v241 = vpop.trf.xlu0
        %v242 = vpop.trf.xlu0
        %v243 = vpop.trf.xlu0
        %v244 = vpop.trf.xlu0
        %v245 = vpop.trf.xlu0
        %v246 = vpop.trf.xlu0
        %v247 = vpop.trf.xlu0
        %v248 = vpop.trf.xlu0
        %v249 = vpop.trf.xlu0
        %vm250 = vcmask 97280
        %251 = vst.msk [vmem:[#allocation2] sm:$0xff] %vm250, 0.0
        %252 = vst.msk [vmem:[#allocation2 + $0x8] sm:$0xff] %vm250, 0.0
        %253 = vst.msk [vmem:[#allocation2 + $0x110] sm:$0xff] %vm250, 0.0
        %254 = vst.msk [vmem:[#allocation2 + $0x118] sm:$0xff] %vm250, 0.0
        %v255 = vlaneseq
        %v256 = vshrl.u32 %v255, 7
        %v257 = vadd.s32 %v256, 8
        %v258 = vadd.s32 %v256, 16
        %v259 = vadd.s32 %v256, 24
        %v260 = vadd.s32 %v256, 32
        %v261 = vadd.s32 %v256, 40
        %v262 = vadd.s32 %v256, 48
        %v263 = vadd.s32 %v256, 56
        %v264 = vadd.s32 %v256, 64
        %v265 = vadd.s32 %v256, 72
        %v266 = vadd.s32 %v256, 80
        %v267 = vadd.s32 %v256, 88
        %v268 = vadd.s32 %v256, 96
        %v269 = vadd.s32 %v256, 104
        %v270 = vadd.s32 %v256, 112
        %v271 = vadd.s32 %v256, 120
        %v272 = vadd.s32 %v256, 128
        %v273 = vadd.s32 %v256, 136
        %v274 = vadd.s32 %v256, 144
        %v275 = vadd.s32 %v256, 152
        %v276 = vadd.s32 %v256, 160
        %v277 = vadd.s32 %v256, 168
        %v278 = vadd.s32 %v256, 176
        %v279 = vadd.s32 %v256, 184
        %v280 = vadd.s32 %v256, 192
        %v281 = vadd.s32 %v256, 200
        %v282 = vadd.s32 %v256, 208
        %v283 = vadd.s32 %v256, 216
        %v284 = vadd.s32 %v256, 224
        %v285 = vadd.s32 %v256, 232
        %v286 = vadd.s32 %v256, 240
        %v287 = vadd.s32 %v256, 248
        %vm288 = vcmp.lt.s32.totalorder %v256, 0
        %v289 = vsub.s32 0, %v256
        %v290 = vsel %vm288, %v289, %v256
        %v291 = vshrl.u32 %v290, 4
        %v292 = vand.u32 %v290, 15
        %v293 = vsub.s32 0, %v292
        %v294 = vsel %vm288, %v293, %v292
        %vm295 = vcmp.lt.s32.totalorder %v257, 0
        %v296 = vsub.s32 0, %v257
        %v297 = vsel %vm295, %v296, %v257
        %v298 = vshrl.u32 %v297, 4
        %v299 = vand.u32 %v297, 15
        %v300 = vsub.s32 0, %v299
        %v301 = vsel %vm295, %v300, %v299
        %vm302 = vcmp.lt.s32.totalorder %v258, 0
        %v303 = vsub.s32 0, %v258
        %v304 = vsel %vm302, %v303, %v258
        %v305 = vshrl.u32 %v304, 4
        %v306 = vand.u32 %v304, 15
        %v307 = vsub.s32 0, %v306
        %v308 = vsel %vm302, %v307, %v306
        %vm309 = vcmp.lt.s32.totalorder %v259, 0
        %v310 = vsub.s32 0, %v259
        %v311 = vsel %vm309, %v310, %v259
        %v312 = vshrl.u32 %v311, 4
        %v313 = vand.u32 %v311, 15
        %v314 = vsub.s32 0, %v313
        %v315 = vsel %vm309, %v314, %v313
        %vm316 = vcmp.lt.s32.totalorder %v260, 0
        %v317 = vsub.s32 0, %v260
        %v318 = vsel %vm316, %v317, %v260
        %v319 = vshrl.u32 %v318, 4
        %v320 = vand.u32 %v318, 15
        %v321 = vsub.s32 0, %v320
        %v322 = vsel %vm316, %v321, %v320
        %vm323 = vcmp.lt.s32.totalorder %v261, 0
        %v324 = vsub.s32 0, %v261
        %v325 = vsel %vm323, %v324, %v261
        %v326 = vshrl.u32 %v325, 4
        %v327 = vand.u32 %v325, 15
        %v328 = vsub.s32 0, %v327
        %v329 = vsel %vm323, %v328, %v327
        %vm330 = vcmp.lt.s32.totalorder %v262, 0
        %v331 = vsub.s32 0, %v262
        %v332 = vsel %vm330, %v331, %v262
        %v333 = vshrl.u32 %v332, 4
        %v334 = vand.u32 %v332, 15
        %v335 = vsub.s32 0, %v334
        %v336 = vsel %vm330, %v335, %v334
        %vm337 = vcmp.lt.s32.totalorder %v263, 0
        %v338 = vsub.s32 0, %v263
        %v339 = vsel %vm337, %v338, %v263
        %v340 = vshrl.u32 %v339, 4
        %v341 = vand.u32 %v339, 15
        %v342 = vsub.s32 0, %v341
        %v343 = vsel %vm337, %v342, %v341
        %vm344 = vcmp.lt.s32.totalorder %v264, 0
        %v345 = vsub.s32 0, %v264
        %v346 = vsel %vm344, %v345, %v264
        %v347 = vshrl.u32 %v346, 4
        %v348 = vand.u32 %v346, 15
        %v349 = vsub.s32 0, %v348
        %v350 = vsel %vm344, %v349, %v348
        %vm351 = vcmp.lt.s32.totalorder %v265, 0
        %v352 = vsub.s32 0, %v265
        %v353 = vsel %vm351, %v352, %v265
        %v354 = vshrl.u32 %v353, 4
        %v355 = vand.u32 %v353, 15
        %v356 = vsub.s32 0, %v355
        %v357 = vsel %vm351, %v356, %v355
        %vm358 = vcmp.lt.s32.totalorder %v266, 0
        %v359 = vsub.s32 0, %v266
        %v360 = vsel %vm358, %v359, %v266
        %v361 = vshrl.u32 %v360, 4
        %v362 = vand.u32 %v360, 15
        %v363 = vsub.s32 0, %v362
        %v364 = vsel %vm358, %v363, %v362
        %vm365 = vcmp.lt.s32.totalorder %v267, 0
        %v366 = vsub.s32 0, %v267
        %v367 = vsel %vm365, %v366, %v267
        %v368 = vshrl.u32 %v367, 4
        %v369 = vand.u32 %v367, 15
        %v370 = vsub.s32 0, %v369
        %v371 = vsel %vm365, %v370, %v369
        %vm372 = vcmp.lt.s32.totalorder %v268, 0
        %v373 = vsub.s32 0, %v268
        %v374 = vsel %vm372, %v373, %v268
        %v375 = vshrl.u32 %v374, 4
        %v376 = vand.u32 %v374, 15
        %v377 = vsub.s32 0, %v376
        %v378 = vsel %vm372, %v377, %v376
        %vm379 = vcmp.lt.s32.totalorder %v269, 0
        %v380 = vsub.s32 0, %v269
        %v381 = vsel %vm379, %v380, %v269
        %v382 = vshrl.u32 %v381, 4
        %v383 = vand.u32 %v381, 15
        %v384 = vsub.s32 0, %v383
        %v385 = vsel %vm379, %v384, %v383
        %vm386 = vcmp.lt.s32.totalorder %v270, 0
        %v387 = vsub.s32 0, %v270
        %v388 = vsel %vm386, %v387, %v270
        %v389 = vshrl.u32 %v388, 4
        %v390 = vand.u32 %v388, 15
        %v391 = vsub.s32 0, %v390
        %v392 = vsel %vm386, %v391, %v390
        %vm393 = vcmp.lt.s32.totalorder %v271, 0
        %v394 = vsub.s32 0, %v271
        %v395 = vsel %vm393, %v394, %v271
        %v396 = vshrl.u32 %v395, 4
        %v397 = vand.u32 %v395, 15
        %v398 = vsub.s32 0, %v397
        %v399 = vsel %vm393, %v398, %v397
        %vm400 = vcmp.lt.s32.totalorder %v272, 0
        %v401 = vsub.s32 0, %v272
        %v402 = vsel %vm400, %v401, %v272
        %v403 = vshrl.u32 %v402, 4
        %v404 = vand.u32 %v402, 15
        %v405 = vsub.s32 0, %v404
        %v406 = vsel %vm400, %v405, %v404
        %vm407 = vcmp.lt.s32.totalorder %v273, 0
        %v408 = vsub.s32 0, %v273
        %v409 = vsel %vm407, %v408, %v273
        %v410 = vshrl.u32 %v409, 4
        %v411 = vand.u32 %v409, 15
        %v412 = vsub.s32 0, %v411
        %v413 = vsel %vm407, %v412, %v411
        %vm414 = vcmp.lt.s32.totalorder %v274, 0
        %v415 = vsub.s32 0, %v274
        %v416 = vsel %vm414, %v415, %v274
        %v417 = vshrl.u32 %v416, 4
        %v418 = vand.u32 %v416, 15
        %v419 = vsub.s32 0, %v418
        %v420 = vsel %vm414, %v419, %v418
        %vm421 = vcmp.lt.s32.totalorder %v275, 0
        %v422 = vsub.s32 0, %v275
        %v423 = vsel %vm421, %v422, %v275
        %v424 = vshrl.u32 %v423, 4
        %v425 = vand.u32 %v423, 15
        %v426 = vsub.s32 0, %v425
        %v427 = vsel %vm421, %v426, %v425
        %vm428 = vcmp.lt.s32.totalorder %v276, 0
        %v429 = vsub.s32 0, %v276
        %v430 = vsel %vm428, %v429, %v276
        %v431 = vshrl.u32 %v430, 4
        %v432 = vand.u32 %v430, 15
        %v433 = vsub.s32 0, %v432
        %v434 = vsel %vm428, %v433, %v432
        %vm435 = vcmp.lt.s32.totalorder %v277, 0
        %v436 = vsub.s32 0, %v277
        %v437 = vsel %vm435, %v436, %v277
        %v438 = vshrl.u32 %v437, 4
        %v439 = vand.u32 %v437, 15
        %v440 = vsub.s32 0, %v439
        %v441 = vsel %vm435, %v440, %v439
        %vm442 = vcmp.lt.s32.totalorder %v278, 0
        %v443 = vsub.s32 0, %v278
        %v444 = vsel %vm442, %v443, %v278
        %v445 = vshrl.u32 %v444, 4
        %v446 = vand.u32 %v444, 15
        %v447 = vsub.s32 0, %v446
        %v448 = vsel %vm442, %v447, %v446
        %vm449 = vcmp.lt.s32.totalorder %v279, 0
        %v450 = vsub.s32 0, %v279
        %v451 = vsel %vm449, %v450, %v279
        %v452 = vshrl.u32 %v451, 4
        %v453 = vand.u32 %v451, 15
        %v454 = vsub.s32 0, %v453
        %v455 = vsel %vm449, %v454, %v453
        %vm456 = vcmp.lt.s32.totalorder %v280, 0
        %v457 = vsub.s32 0, %v280
        %v458 = vsel %vm456, %v457, %v280
        %v459 = vshrl.u32 %v458, 4
        %v460 = vand.u32 %v458, 15
        %v461 = vsub.s32 0, %v460
        %v462 = vsel %vm456, %v461, %v460
        %vm463 = vcmp.lt.s32.totalorder %v281, 0
        %v464 = vsub.s32 0, %v281
        %v465 = vsel %vm463, %v464, %v281
        %v466 = vshrl.u32 %v465, 4
        %v467 = vand.u32 %v465, 15
        %v468 = vsub.s32 0, %v467
        %v469 = vsel %vm463, %v468, %v467
        %vm470 = vcmp.lt.s32.totalorder %v282, 0
        %v471 = vsub.s32 0, %v282
        %v472 = vsel %vm470, %v471, %v282
        %v473 = vshrl.u32 %v472, 4
        %v474 = vand.u32 %v472, 15
        %v475 = vsub.s32 0, %v474
        %v476 = vsel %vm470, %v475, %v474
        %vm477 = vcmp.lt.s32.totalorder %v283, 0
        %v478 = vsub.s32 0, %v283
        %v479 = vsel %vm477, %v478, %v283
        %v480 = vshrl.u32 %v479, 4
        %v481 = vand.u32 %v479, 15
        %v482 = vsub.s32 0, %v481
        %v483 = vsel %vm477, %v482, %v481
        %vm484 = vcmp.lt.s32.totalorder %v284, 0
        %v485 = vsub.s32 0, %v284
        %v486 = vsel %vm484, %v485, %v284
        %v487 = vshrl.u32 %v486, 4
        %v488 = vand.u32 %v486, 15
        %v489 = vsub.s32 0, %v488
        %v490 = vsel %vm484, %v489, %v488
        %vm491 = vcmp.lt.s32.totalorder %v285, 0
        %v492 = vsub.s32 0, %v285
        %v493 = vsel %vm491, %v492, %v285
        %v494 = vshrl.u32 %v493, 4
        %v495 = vand.u32 %v493, 15
        %v496 = vsub.s32 0, %v495
        %v497 = vsel %vm491, %v496, %v495
        %vm498 = vcmp.lt.s32.totalorder %v286, 0
        %v499 = vsub.s32 0, %v286
        %v500 = vsel %vm498, %v499, %v286
        %v501 = vshrl.u32 %v500, 4
        %v502 = vand.u32 %v500, 15
        %v503 = vsub.s32 0, %v502
        %v504 = vsel %vm498, %v503, %v502
        %vm505 = vcmp.lt.s32.totalorder %v287, 0
        %v506 = vsub.s32 0, %v287
        %v507 = vsel %vm505, %v506, %v287
        %v508 = vshrl.u32 %v507, 4
        %v509 = vand.u32 %v507, 15
        %v510 = vsub.s32 0, %v509
        %v511 = vsel %vm505, %v510, %v509
        %vm512 = vcmp.ne.s32.totalorder %v294, 0
        %vm513 = vcmp.ne.s32.totalorder %v301, 0
        %vm514 = vcmp.ne.s32.totalorder %v308, 0
        %vm515 = vcmp.ne.s32.totalorder %v315, 0
        %vm516 = vcmp.ne.s32.totalorder %v322, 0
        %vm517 = vcmp.ne.s32.totalorder %v329, 0
        %vm518 = vcmp.ne.s32.totalorder %v336, 0
        %vm519 = vcmp.ne.s32.totalorder %v343, 0
        %vm520 = vcmp.ne.s32.totalorder %v350, 0
        %vm521 = vcmp.ne.s32.totalorder %v357, 0
        %vm522 = vcmp.ne.s32.totalorder %v364, 0
        %vm523 = vcmp.ne.s32.totalorder %v371, 0
        %vm524 = vcmp.ne.s32.totalorder %v378, 0
        %vm525 = vcmp.ne.s32.totalorder %v385, 0
        %vm526 = vcmp.ne.s32.totalorder %v392, 0
        %vm527 = vcmp.ne.s32.totalorder %v399, 0
        %vm528 = vcmp.ne.s32.totalorder %v406, 0
        %vm529 = vcmp.ne.s32.totalorder %v413, 0
        %vm530 = vcmp.ne.s32.totalorder %v420, 0
        %vm531 = vcmp.ne.s32.totalorder %v427, 0
        %vm532 = vcmp.ne.s32.totalorder %v434, 0
        %vm533 = vcmp.ne.s32.totalorder %v441, 0
        %vm534 = vcmp.ne.s32.totalorder %v448, 0
        %vm535 = vcmp.ne.s32.totalorder %v455, 0
        %vm536 = vcmp.ne.s32.totalorder %v462, 0
        %vm537 = vcmp.ne.s32.totalorder %v469, 0
        %vm538 = vcmp.ne.s32.totalorder %v476, 0
        %vm539 = vcmp.ne.s32.totalorder %v483, 0
        %vm540 = vcmp.ne.s32.totalorder %v490, 0
        %vm541 = vcmp.ne.s32.totalorder %v497, 0
        %vm542 = vcmp.ne.s32.totalorder %v504, 0
        %vm543 = vcmp.ne.s32.totalorder %v511, 0
        %vm544 = vcmp.lt.s32.totalorder %v294, 0
        %vm545 = vcmp.lt.s32.totalorder %v301, 0
        %vm546 = vcmp.lt.s32.totalorder %v308, 0
        %vm547 = vcmp.lt.s32.totalorder %v315, 0
        %vm548 = vcmp.lt.s32.totalorder %v322, 0
        %vm549 = vcmp.lt.s32.totalorder %v329, 0
        %vm550 = vcmp.lt.s32.totalorder %v336, 0
        %vm551 = vcmp.lt.s32.totalorder %v343, 0
        %vm552 = vcmp.lt.s32.totalorder %v350, 0
        %vm553 = vcmp.lt.s32.totalorder %v357, 0
        %vm554 = vcmp.lt.s32.totalorder %v364, 0
        %vm555 = vcmp.lt.s32.totalorder %v371, 0
        %vm556 = vcmp.lt.s32.totalorder %v378, 0
        %vm557 = vcmp.lt.s32.totalorder %v385, 0
        %vm558 = vcmp.lt.s32.totalorder %v392, 0
        %vm559 = vcmp.lt.s32.totalorder %v399, 0
        %vm560 = vcmp.lt.s32.totalorder %v406, 0
        %vm561 = vcmp.lt.s32.totalorder %v413, 0
        %vm562 = vcmp.lt.s32.totalorder %v420, 0
        %vm563 = vcmp.lt.s32.totalorder %v427, 0
        %vm564 = vcmp.lt.s32.totalorder %v434, 0
        %vm565 = vcmp.lt.s32.totalorder %v441, 0
        %vm566 = vcmp.lt.s32.totalorder %v448, 0
        %vm567 = vcmp.lt.s32.totalorder %v455, 0
        %vm568 = vcmp.lt.s32.totalorder %v462, 0
        %vm569 = vcmp.lt.s32.totalorder %v469, 0
        %vm570 = vcmp.lt.s32.totalorder %v476, 0
        %vm571 = vcmp.lt.s32.totalorder %v483, 0
        %vm572 = vcmp.lt.s32.totalorder %v490, 0
        %vm573 = vcmp.lt.s32.totalorder %v497, 0
        %vm574 = vcmp.lt.s32.totalorder %v504, 0
        %vm575 = vcmp.lt.s32.totalorder %v511, 0
        %vm576 = vmand %vm544, %vm512
        %vm577 = vmand %vm545, %vm513
        %vm578 = vmand %vm546, %vm514
        %vm579 = vmand %vm547, %vm515
        %vm580 = vmand %vm548, %vm516
        %vm581 = vmand %vm549, %vm517
        %vm582 = vmand %vm550, %vm518
        %vm583 = vmand %vm551, %vm519
        %vm584 = vmand %vm552, %vm520
        %vm585 = vmand %vm553, %vm521
        %vm586 = vmand %vm554, %vm522
        %vm587 = vmand %vm555, %vm523
        %vm588 = vmand %vm556, %vm524
        %vm589 = vmand %vm557, %vm525
        %vm590 = vmand %vm558, %vm526
        %vm591 = vmand %vm559, %vm527
        %vm592 = vmand %vm560, %vm528
        %vm593 = vmand %vm561, %vm529
        %vm594 = vmand %vm562, %vm530
        %vm595 = vmand %vm563, %vm531
        %vm596 = vmand %vm564, %vm532
        %vm597 = vmand %vm565, %vm533
        %vm598 = vmand %vm566, %vm534
        %vm599 = vmand %vm567, %vm535
        %vm600 = vmand %vm568, %vm536
        %vm601 = vmand %vm569, %vm537
        %vm602 = vmand %vm570, %vm538
        %vm603 = vmand %vm571, %vm539
        %vm604 = vmand %vm572, %vm540
        %vm605 = vmand %vm573, %vm541
        %vm606 = vmand %vm574, %vm542
        %vm607 = vmand %vm575, %vm543
        %v608 = vadd.s32 %v294, 16
        %v609 = vadd.s32 %v301, 16
        %v610 = vadd.s32 %v308, 16
        %v611 = vadd.s32 %v315, 16
        %v612 = vadd.s32 %v322, 16
        %v613 = vadd.s32 %v329, 16
        %v614 = vadd.s32 %v336, 16
        %v615 = vadd.s32 %v343, 16
        %v616 = vadd.s32 %v350, 16
        %v617 = vadd.s32 %v357, 16
        %v618 = vadd.s32 %v364, 16
        %v619 = vadd.s32 %v371, 16
        %v620 = vadd.s32 %v378, 16
        %v621 = vadd.s32 %v385, 16
        %v622 = vadd.s32 %v392, 16
        %v623 = vadd.s32 %v399, 16
        %v624 = vadd.s32 %v406, 16
        %v625 = vadd.s32 %v413, 16
        %v626 = vadd.s32 %v420, 16
        %v627 = vadd.s32 %v427, 16
        %v628 = vadd.s32 %v434, 16
        %v629 = vadd.s32 %v441, 16
        %v630 = vadd.s32 %v448, 16
        %v631 = vadd.s32 %v455, 16
        %v632 = vadd.s32 %v462, 16
        %v633 = vadd.s32 %v469, 16
        %v634 = vadd.s32 %v476, 16
        %v635 = vadd.s32 %v483, 16
        %v636 = vadd.s32 %v490, 16
        %v637 = vadd.s32 %v497, 16
        %v638 = vadd.s32 %v504, 16
        %v639 = vadd.s32 %v511, 16
        %v640 = vsel %vm576, %v608, %v294
        %v641 = vsel %vm577, %v609, %v301
        %v642 = vsel %vm578, %v610, %v308
        %v643 = vsel %vm579, %v611, %v315
        %v644 = vsel %vm580, %v612, %v322
        %v645 = vsel %vm581, %v613, %v329
        %v646 = vsel %vm582, %v614, %v336
        %v647 = vsel %vm583, %v615, %v343
        %v648 = vsel %vm584, %v616, %v350
        %v649 = vsel %vm585, %v617, %v357
        %v650 = vsel %vm586, %v618, %v364
        %v651 = vsel %vm587, %v619, %v371
        %v652 = vsel %vm588, %v620, %v378
        %v653 = vsel %vm589, %v621, %v385
        %v654 = vsel %vm590, %v622, %v392
        %v655 = vsel %vm591, %v623, %v399
        %v656 = vsel %vm592, %v624, %v406
        %v657 = vsel %vm593, %v625, %v413
        %v658 = vsel %vm594, %v626, %v420
        %v659 = vsel %vm595, %v627, %v427
        %v660 = vsel %vm596, %v628, %v434
        %v661 = vsel %vm597, %v629, %v441
        %v662 = vsel %vm598, %v630, %v448
        %v663 = vsel %vm599, %v631, %v455
        %v664 = vsel %vm600, %v632, %v462
        %v665 = vsel %vm601, %v633, %v469
        %v666 = vsel %vm602, %v634, %v476
        %v667 = vsel %vm603, %v635, %v483
        %v668 = vsel %vm604, %v636, %v490
        %v669 = vsel %vm605, %v637, %v497
        %v670 = vsel %vm606, %v638, %v504
        %v671 = vsel %vm607, %v639, %v511
        %vm704 = vcmask 1040384
        %v705 = vrot.slane %v202, 7
        %v706 = vrot.slane %v203, 7
        %v707 = vsel %vm704, %v705, %v706
        %v708 = vrot.slane %v204, 7
        %v709 = vsel %vm704, %v706, %v708
        %v710 = vrot.slane %v205, 7
        %v711 = vsel %vm704, %v708, %v710
        %v712 = vrot.slane %v206, 7
        %v713 = vsel %vm704, %v710, %v712
        %v714 = vrot.slane %v207, 7
        %v715 = vsel %vm704, %v712, %v714
        %v716 = vrot.slane %v208, 7
        %v717 = vsel %vm704, %v714, %v716
        %v718 = vrot.slane %v209, 7
        %v719 = vsel %vm704, %v716, %v718
        %v720 = vrot.slane %v210, 7
        %v721 = vsel %vm704, %v718, %v720
        %v722 = vrot.slane %v211, 7
        %v723 = vsel %vm704, %v720, %v722
        %v724 = vrot.slane %v212, 7
        %v725 = vsel %vm704, %v722, %v724
        %v726 = vrot.slane %v213, 7
        %v727 = vsel %vm704, %v724, %v726
        %v728 = vrot.slane %v214, 7
        %v729 = vsel %vm704, %v726, %v728
        %v730 = vrot.slane %v215, 7
        %v731 = vsel %vm704, %v728, %v730
        %v732 = vrot.slane %v216, 7
        %v733 = vsel %vm704, %v730, %v732
        %v734 = vrot.slane %v217, 7
        %v735 = vsel %vm704, %v732, %v734
        %v736 = vrot.slane %v234, 7
        %v737 = vsel %vm704, %v734, %v736
        %v738 = vrot.slane %v235, 7
        %v739 = vsel %vm704, %v736, %v738
        %v740 = vrot.slane %v236, 7
        %v741 = vsel %vm704, %v738, %v740
        %v742 = vrot.slane %v237, 7
        %v743 = vsel %vm704, %v740, %v742
        %v744 = vrot.slane %v238, 7
        %v745 = vsel %vm704, %v742, %v744
        %v746 = vrot.slane %v239, 7
        %v747 = vsel %vm704, %v744, %v746
        %v748 = vrot.slane %v240, 7
        %v749 = vsel %vm704, %v746, %v748
        %v750 = vrot.slane %v241, 7
        %v751 = vsel %vm704, %v748, %v750
        %v752 = vrot.slane %v242, 7
        %v753 = vsel %vm704, %v750, %v752
        %v754 = vrot.slane %v243, 7
        %v755 = vsel %vm704, %v752, %v754
        %v756 = vrot.slane %v244, 7
        %v757 = vsel %vm704, %v754, %v756
        %v758 = vrot.slane %v245, 7
        %v759 = vsel %vm704, %v756, %v758
        %v760 = vrot.slane %v246, 7
        %v761 = vsel %vm704, %v758, %v760
        %v762 = vrot.slane %v247, 7
        %v763 = vsel %vm704, %v760, %v762
        %v764 = vrot.slane %v248, 7
        %v765 = vsel %vm704, %v762, %v764
        %v766 = vrot.slane %v249, 7
        %v767 = vsel %vm704, %v764, %v766
        %v800 = vsel %vm704, 0.0, %v705
        %vm801 = vcmp.eq.s32.totalorder %v640, 0
        %vm802 = vcmp.eq.s32.totalorder %v641, 0
        %vm803 = vcmp.eq.s32.totalorder %v642, 0
        %vm804 = vcmp.eq.s32.totalorder %v643, 0
        %vm805 = vcmp.eq.s32.totalorder %v644, 0
        %vm806 = vcmp.eq.s32.totalorder %v645, 0
        %vm807 = vcmp.eq.s32.totalorder %v646, 0
        %vm808 = vcmp.eq.s32.totalorder %v647, 0
        %vm809 = vcmp.eq.s32.totalorder %v648, 0
        %vm810 = vcmp.eq.s32.totalorder %v649, 0
        %vm811 = vcmp.eq.s32.totalorder %v650, 0
        %vm812 = vcmp.eq.s32.totalorder %v651, 0
        %vm813 = vcmp.eq.s32.totalorder %v652, 0
        %vm814 = vcmp.eq.s32.totalorder %v653, 0
        %vm815 = vcmp.eq.s32.totalorder %v654, 0
        %vm816 = vcmp.eq.s32.totalorder %v655, 0
        %vm817 = vcmp.eq.s32.totalorder %v656, 0
        %vm818 = vcmp.eq.s32.totalorder %v657, 0
        %vm819 = vcmp.eq.s32.totalorder %v658, 0
        %vm820 = vcmp.eq.s32.totalorder %v659, 0
        %vm821 = vcmp.eq.s32.totalorder %v660, 0
        %vm822 = vcmp.eq.s32.totalorder %v661, 0
        %vm823 = vcmp.eq.s32.totalorder %v662, 0
        %vm824 = vcmp.eq.s32.totalorder %v663, 0
        %vm825 = vcmp.eq.s32.totalorder %v664, 0
        %vm826 = vcmp.eq.s32.totalorder %v665, 0
        %vm827 = vcmp.eq.s32.totalorder %v666, 0
        %vm828 = vcmp.eq.s32.totalorder %v667, 0
        %vm829 = vcmp.eq.s32.totalorder %v668, 0
        %vm830 = vcmp.eq.s32.totalorder %v669, 0
        %vm831 = vcmp.eq.s32.totalorder %v670, 0
        %vm832 = vcmp.eq.s32.totalorder %v671, 0
        %v833 = vsel %vm801, 1, 0
        %v834 = vsel %vm802, 1, 0
        %v835 = vsel %vm803, 1, 0
        %v836 = vsel %vm804, 1, 0
        %v837 = vsel %vm805, 1, 0
        %v838 = vsel %vm806, 1, 0
        %v839 = vsel %vm807, 1, 0
        %v840 = vsel %vm808, 1, 0
        %v841 = vsel %vm809, 1, 0
        %v842 = vsel %vm810, 1, 0
        %v843 = vsel %vm811, 1, 0
        %v844 = vsel %vm812, 1, 0
        %v845 = vsel %vm813, 1, 0
        %v846 = vsel %vm814, 1, 0
        %v847 = vsel %vm815, 1, 0
        %v848 = vsel %vm816, 1, 0
        %v849 = vsel %vm817, 1, 0
        %v850 = vsel %vm818, 1, 0
        %v851 = vsel %vm819, 1, 0
        %v852 = vsel %vm820, 1, 0
        %v853 = vsel %vm821, 1, 0
        %v854 = vsel %vm822, 1, 0
        %v855 = vsel %vm823, 1, 0
        %v856 = vsel %vm824, 1, 0
        %v857 = vsel %vm825, 1, 0
        %v858 = vsel %vm826, 1, 0
        %v859 = vsel %vm827, 1, 0
        %v860 = vsel %vm828, 1, 0
        %v861 = vsel %vm829, 1, 0
        %v862 = vsel %vm830, 1, 0
        %v863 = vsel %vm831, 1, 0
        %v864 = vsel %vm832, 1, 0
        %vm865 = vcmp.eq.s32.totalorder %v833, 1
        %vm866 = vcmp.eq.s32.totalorder %v834, 1
        %vm867 = vcmp.eq.s32.totalorder %v835, 1
        %vm868 = vcmp.eq.s32.totalorder %v836, 1
        %vm869 = vcmp.eq.s32.totalorder %v837, 1
        %vm870 = vcmp.eq.s32.totalorder %v838, 1
        %vm871 = vcmp.eq.s32.totalorder %v839, 1
        %vm872 = vcmp.eq.s32.totalorder %v840, 1
        %vm873 = vcmp.eq.s32.totalorder %v841, 1
        %vm874 = vcmp.eq.s32.totalorder %v842, 1
        %vm875 = vcmp.eq.s32.totalorder %v843, 1
        %vm876 = vcmp.eq.s32.totalorder %v844, 1
        %vm877 = vcmp.eq.s32.totalorder %v845, 1
        %vm878 = vcmp.eq.s32.totalorder %v846, 1
        %vm879 = vcmp.eq.s32.totalorder %v847, 1
        %vm880 = vcmp.eq.s32.totalorder %v848, 1
        %vm881 = vcmp.eq.s32.totalorder %v849, 1
        %vm882 = vcmp.eq.s32.totalorder %v850, 1
        %vm883 = vcmp.eq.s32.totalorder %v851, 1
        %vm884 = vcmp.eq.s32.totalorder %v852, 1
        %vm885 = vcmp.eq.s32.totalorder %v853, 1
        %vm886 = vcmp.eq.s32.totalorder %v854, 1
        %vm887 = vcmp.eq.s32.totalorder %v855, 1
        %vm888 = vcmp.eq.s32.totalorder %v856, 1
        %vm889 = vcmp.eq.s32.totalorder %v857, 1
        %vm890 = vcmp.eq.s32.totalorder %v858, 1
        %vm891 = vcmp.eq.s32.totalorder %v859, 1
        %vm892 = vcmp.eq.s32.totalorder %v860, 1
        %vm893 = vcmp.eq.s32.totalorder %v861, 1
        %vm894 = vcmp.eq.s32.totalorder %v862, 1
        %vm895 = vcmp.eq.s32.totalorder %v863, 1
        %vm896 = vcmp.eq.s32.totalorder %v864, 1
        %v897 = vsel %vm865, 0.0, %v800
        %v898 = vsel %vm866, 0.0, %v707
        %v899 = vsel %vm867, 0.0, %v709
        %v900 = vsel %vm868, 0.0, %v711
        %v901 = vsel %vm869, 0.0, %v713
        %v902 = vsel %vm870, 0.0, %v715
        %v903 = vsel %vm871, 0.0, %v717
        %v904 = vsel %vm872, 0.0, %v719
        %v905 = vsel %vm873, 0.0, %v721
        %v906 = vsel %vm874, 0.0, %v723
        %v907 = vsel %vm875, 0.0, %v725
        %v908 = vsel %vm876, 0.0, %v727
        %v909 = vsel %vm877, 0.0, %v729
        %v910 = vsel %vm878, 0.0, %v731
        %v911 = vsel %vm879, 0.0, %v733
        %v912 = vsel %vm880, 0.0, %v735
        %v913 = vsel %vm881, 0.0, %v737
        %v914 = vsel %vm882, 0.0, %v739
        %v915 = vsel %vm883, 0.0, %v741
        %v916 = vsel %vm884, 0.0, %v743
        %v917 = vsel %vm885, 0.0, %v745
        %v918 = vsel %vm886, 0.0, %v747
        %v919 = vsel %vm887, 0.0, %v749
        %v920 = vsel %vm888, 0.0, %v751
        %v921 = vsel %vm889, 0.0, %v753
        %v922 = vsel %vm890, 0.0, %v755
        %v923 = vsel %vm891, 0.0, %v757
        %v924 = vsel %vm892, 0.0, %v759
        %v925 = vsel %vm893, 0.0, %v761
        %v926 = vsel %vm894, 0.0, %v763
        %v927 = vsel %vm895, 0.0, %v765
        %v928 = vsel %vm896, 0.0, %v767
        %vm929 = vcmask 31744
        %930 = vst.msk [vmem:[#allocation2 + $0x10] sm:$0xff] %vm929, %v897
        %931 = vst.msk [vmem:[#allocation2 + $0x18] sm:$0xff] %vm929, %v898
        %932 = vst.msk [vmem:[#allocation2 + $0x20] sm:$0xff] %vm929, %v899
        %933 = vst.msk [vmem:[#allocation2 + $0x28] sm:$0xff] %vm929, %v900
        %934 = vst.msk [vmem:[#allocation2 + $0x30] sm:$0xff] %vm929, %v901
        %935 = vst.msk [vmem:[#allocation2 + $0x38] sm:$0xff] %vm929, %v902
        %936 = vst.msk [vmem:[#allocation2 + $0x40] sm:$0xff] %vm929, %v903
        %937 = vst.msk [vmem:[#allocation2 + $0x48] sm:$0xff] %vm929, %v904
        %938 = vst.msk [vmem:[#allocation2 + $0x50] sm:$0xff] %vm929, %v905
        %939 = vst.msk [vmem:[#allocation2 + $0x58] sm:$0xff] %vm929, %v906
        %940 = vst.msk [vmem:[#allocation2 + $0x60] sm:$0xff] %vm929, %v907
        %941 = vst.msk [vmem:[#allocation2 + $0x68] sm:$0xff] %vm929, %v908
        %942 = vst.msk [vmem:[#allocation2 + $0x70] sm:$0xff] %vm929, %v909
        %943 = vst.msk [vmem:[#allocation2 + $0x78] sm:$0xff] %vm929, %v910
        %944 = vst.msk [vmem:[#allocation2 + $0x80] sm:$0xff] %vm929, %v911
        %945 = vst.msk [vmem:[#allocation2 + $0x88] sm:$0xff] %vm929, %v912
        %946 = vst.msk [vmem:[#allocation2 + $0x90] sm:$0xff] %vm929, %v913
        %947 = vst.msk [vmem:[#allocation2 + $0x98] sm:$0xff] %vm929, %v914
        %948 = vst.msk [vmem:[#allocation2 + $0xa0] sm:$0xff] %vm929, %v915
        %949 = vst.msk [vmem:[#allocation2 + $0xa8] sm:$0xff] %vm929, %v916
        %950 = vst.msk [vmem:[#allocation2 + $0xb0] sm:$0xff] %vm929, %v917
        %951 = vst.msk [vmem:[#allocation2 + $0xb8] sm:$0xff] %vm929, %v918
        %952 = vst.msk [vmem:[#allocation2 + $0xc0] sm:$0xff] %vm929, %v919
        %953 = vst.msk [vmem:[#allocation2 + $0xc8] sm:$0xff] %vm929, %v920
        %954 = vst.msk [vmem:[#allocation2 + $0xd0] sm:$0xff] %vm929, %v921
        %955 = vst.msk [vmem:[#allocation2 + $0xd8] sm:$0xff] %vm929, %v922
        %956 = vst.msk [vmem:[#allocation2 + $0xe0] sm:$0xff] %vm929, %v923
        %957 = vst.msk [vmem:[#allocation2 + $0xe8] sm:$0xff] %vm929, %v924
        %958 = vst.msk [vmem:[#allocation2 + $0xf0] sm:$0xff] %vm929, %v925
        %959 = vst.msk [vmem:[#allocation2 + $0xf8] sm:$0xff] %vm929, %v926
        %960 = vst.msk [vmem:[#allocation2 + $0x100] sm:$0xff] %vm929, %v927
        %961 = vst.msk [vmem:[#allocation2 + $0x108] sm:$0xff] %vm929, %v928
        %962 = vrot.lane.b32.xlu0 %v202, 4
        %v963 = vpop.permute.xlu0 %962
        %964 = vrot.lane.b32.xlu0 %v203, 4
        %v965 = vpop.permute.xlu0 %964
        %966 = vrot.lane.b32.xlu0 %v204, 4
        %v967 = vpop.permute.xlu0 %966
        %968 = vrot.lane.b32.xlu0 %v205, 4
        %v969 = vpop.permute.xlu0 %968
        %970 = vrot.lane.b32.xlu0 %v206, 4
        %v971 = vpop.permute.xlu0 %970
        %972 = vrot.lane.b32.xlu0 %v207, 4
        %v973 = vpop.permute.xlu0 %972
        %974 = vrot.lane.b32.xlu0 %v208, 4
        %v975 = vpop.permute.xlu0 %974
        %976 = vrot.lane.b32.xlu0 %v209, 4
        %v977 = vpop.permute.xlu0 %976
        %978 = vrot.lane.b32.xlu0 %v210, 4
        %v979 = vpop.permute.xlu0 %978
        %980 = vrot.lane.b32.xlu0 %v211, 4
        %v981 = vpop.permute.xlu0 %980
        %982 = vrot.lane.b32.xlu0 %v212, 4
        %v983 = vpop.permute.xlu0 %982
        %984 = vrot.lane.b32.xlu0 %v213, 4
        %v985 = vpop.permute.xlu0 %984
        %986 = vrot.lane.b32.xlu0 %v214, 4
        %v987 = vpop.permute.xlu0 %986
        %988 = vrot.lane.b32.xlu0 %v215, 4
        %v989 = vpop.permute.xlu0 %988
        %990 = vrot.lane.b32.xlu0 %v216, 4
        %v991 = vpop.permute.xlu0 %990
        %992 = vrot.lane.b32.xlu0 %v217, 4
        %v993 = vpop.permute.xlu0 %992
        %994 = vrot.lane.b32.xlu0 %v234, 4
        %v995 = vpop.permute.xlu0 %994
        %996 = vrot.lane.b32.xlu0 %v235, 4
        %v997 = vpop.permute.xlu0 %996
        %998 = vrot.lane.b32.xlu0 %v236, 4
        %v999 = vpop.permute.xlu0 %998
        %1000 = vrot.lane.b32.xlu0 %v237, 4
        %v1001 = vpop.permute.xlu0 %1000
        %1002 = vrot.lane.b32.xlu0 %v238, 4
        %v1003 = vpop.permute.xlu0 %1002
        %1004 = vrot.lane.b32.xlu0 %v239, 4
        %v1005 = vpop.permute.xlu0 %1004
        %1006 = vrot.lane.b32.xlu0 %v240, 4
        %v1007 = vpop.permute.xlu0 %1006
        %1008 = vrot.lane.b32.xlu0 %v241, 4
        %v1009 = vpop.permute.xlu0 %1008
        %1010 = vrot.lane.b32.xlu0 %v242, 4
        %v1011 = vpop.permute.xlu0 %1010
        %1012 = vrot.lane.b32.xlu0 %v243, 4
        %v1013 = vpop.permute.xlu0 %1012
        %1014 = vrot.lane.b32.xlu0 %v244, 4
        %v1015 = vpop.permute.xlu0 %1014
        %1016 = vrot.lane.b32.xlu0 %v245, 4
        %v1017 = vpop.permute.xlu0 %1016
        %1018 = vrot.lane.b32.xlu0 %v246, 4
        %v1019 = vpop.permute.xlu0 %1018
        %1020 = vrot.lane.b32.xlu0 %v247, 4
        %v1021 = vpop.permute.xlu0 %1020
        %1022 = vrot.lane.b32.xlu0 %v248, 4
        %v1023 = vpop.permute.xlu0 %1022
        %1024 = vrot.lane.b32.xlu0 %v249, 4
        %v1025 = vpop.permute.xlu0 %1024
        %vm1058 = vcmask 64544
        %1059 = vst.msk [vmem:[#allocation2 + $0x10] sm:$0xff] %vm1058, %v963
        %1060 = vst.msk [vmem:[#allocation2 + $0x18] sm:$0xff] %vm1058, %v965
        %1061 = vst.msk [vmem:[#allocation2 + $0x20] sm:$0xff] %vm1058, %v967
        %1062 = vst.msk [vmem:[#allocation2 + $0x28] sm:$0xff] %vm1058, %v969
        %1063 = vst.msk [vmem:[#allocation2 + $0x30] sm:$0xff] %vm1058, %v971
        %1064 = vst.msk [vmem:[#allocation2 + $0x38] sm:$0xff] %vm1058, %v973
        %1065 = vst.msk [vmem:[#allocation2 + $0x40] sm:$0xff] %vm1058, %v975
        %1066 = vst.msk [vmem:[#allocation2 + $0x48] sm:$0xff] %vm1058, %v977
        %1067 = vst.msk [vmem:[#allocation2 + $0x50] sm:$0xff] %vm1058, %v979
        %1068 = vst.msk [vmem:[#allocation2 + $0x58] sm:$0xff] %vm1058, %v981
        %1069 = vst.msk [vmem:[#allocation2 + $0x60] sm:$0xff] %vm1058, %v983
        %1070 = vst.msk [vmem:[#allocation2 + $0x68] sm:$0xff] %vm1058, %v985
        %1071 = vst.msk [vmem:[#allocation2 + $0x70] sm:$0xff] %vm1058, %v987
        %1072 = vst.msk [vmem:[#allocation2 + $0x78] sm:$0xff] %vm1058, %v989
        %1073 = vst.msk [vmem:[#allocation2 + $0x80] sm:$0xff] %vm1058, %v991
        %1074 = vst.msk [vmem:[#allocation2 + $0x88] sm:$0xff] %vm1058, %v993
        %1075 = vst.msk [vmem:[#allocation2 + $0x90] sm:$0xff] %vm1058, %v995
        %1076 = vst.msk [vmem:[#allocation2 + $0x98] sm:$0xff] %vm1058, %v997
        %1077 = vst.msk [vmem:[#allocation2 + $0xa0] sm:$0xff] %vm1058, %v999
        %1078 = vst.msk [vmem:[#allocation2 + $0xa8] sm:$0xff] %vm1058, %v1001
        %1079 = vst.msk [vmem:[#allocation2 + $0xb0] sm:$0xff] %vm1058, %v1003
        %1080 = vst.msk [vmem:[#allocation2 + $0xb8] sm:$0xff] %vm1058, %v1005
        %1081 = vst.msk [vmem:[#allocation2 + $0xc0] sm:$0xff] %vm1058, %v1007
        %1082 = vst.msk [vmem:[#allocation2 + $0xc8] sm:$0xff] %vm1058, %v1009
        %1083 = vst.msk [vmem:[#allocation2 + $0xd0] sm:$0xff] %vm1058, %v1011
        %1084 = vst.msk [vmem:[#allocation2 + $0xd8] sm:$0xff] %vm1058, %v1013
        %1085 = vst.msk [vmem:[#allocation2 + $0xe0] sm:$0xff] %vm1058, %v1015
        %1086 = vst.msk [vmem:[#allocation2 + $0xe8] sm:$0xff] %vm1058, %v1017
        %1087 = vst.msk [vmem:[#allocation2 + $0xf0] sm:$0xff] %vm1058, %v1019
        %1088 = vst.msk [vmem:[#allocation2 + $0xf8] sm:$0xff] %vm1058, %v1021
        %1089 = vst.msk [vmem:[#allocation2 + $0x100] sm:$0xff] %vm1058, %v1023
        %1090 = vst.msk [vmem:[#allocation2 + $0x108] sm:$0xff] %vm1058, %v1025
        %vm1091 = vcmask 1046528
        %v1092 = vrot.slane %v202, 1
        %v1093 = vrot.slane %v203, 1
        %v1094 = vsel %vm1091, %v1092, %v1093
        %v1095 = vrot.slane %v204, 1
        %v1096 = vsel %vm1091, %v1093, %v1095
        %v1097 = vrot.slane %v205, 1
        %v1098 = vsel %vm1091, %v1095, %v1097
        %v1099 = vrot.slane %v206, 1
        %v1100 = vsel %vm1091, %v1097, %v1099
        %v1101 = vrot.slane %v207, 1
        %v1102 = vsel %vm1091, %v1099, %v1101
        %v1103 = vrot.slane %v208, 1
        %v1104 = vsel %vm1091, %v1101, %v1103
        %v1105 = vrot.slane %v209, 1
        %v1106 = vsel %vm1091, %v1103, %v1105
        %v1107 = vrot.slane %v210, 1
        %v1108 = vsel %vm1091, %v1105, %v1107
        %v1109 = vrot.slane %v211, 1
        %v1110 = vsel %vm1091, %v1107, %v1109
        %v1111 = vrot.slane %v212, 1
        %v1112 = vsel %vm1091, %v1109, %v1111
        %v1113 = vrot.slane %v213, 1
        %v1114 = vsel %vm1091, %v1111, %v1113
        %v1115 = vrot.slane %v214, 1
        %v1116 = vsel %vm1091, %v1113, %v1115
        %v1117 = vrot.slane %v215, 1
        %v1118 = vsel %vm1091, %v1115, %v1117
        %v1119 = vrot.slane %v216, 1
        %v1120 = vsel %vm1091, %v1117, %v1119
        %v1121 = vrot.slane %v217, 1
        %v1122 = vsel %vm1091, %v1119, %v1121
        %v1123 = vrot.slane %v234, 1
        %v1124 = vsel %vm1091, %v1121, %v1123
        %v1125 = vrot.slane %v235, 1
        %v1126 = vsel %vm1091, %v1123, %v1125
        %v1127 = vrot.slane %v236, 1
        %v1128 = vsel %vm1091, %v1125, %v1127
        %v1129 = vrot.slane %v237, 1
        %v1130 = vsel %vm1091, %v1127, %v1129
        %v1131 = vrot.slane %v238, 1
        %v1132 = vsel %vm1091, %v1129, %v1131
        %v1133 = vrot.slane %v239, 1
        %v1134 = vsel %vm1091, %v1131, %v1133
        %v1135 = vrot.slane %v240, 1
        %v1136 = vsel %vm1091, %v1133, %v1135
        %v1137 = vrot.slane %v241, 1
        %v1138 = vsel %vm1091, %v1135, %v1137
        %v1139 = vrot.slane %v242, 1
        %v1140 = vsel %vm1091, %v1137, %v1139
        %v1141 = vrot.slane %v243, 1
        %v1142 = vsel %vm1091, %v1139, %v1141
        %v1143 = vrot.slane %v244, 1
        %v1144 = vsel %vm1091, %v1141, %v1143
        %v1145 = vrot.slane %v245, 1
        %v1146 = vsel %vm1091, %v1143, %v1145
        %v1147 = vrot.slane %v246, 1
        %v1148 = vsel %vm1091, %v1145, %v1147
        %v1149 = vrot.slane %v247, 1
        %v1150 = vsel %vm1091, %v1147, %v1149
        %v1151 = vrot.slane %v248, 1
        %v1152 = vsel %vm1091, %v1149, %v1151
        %v1153 = vrot.slane %v249, 1
        %v1154 = vsel %vm1091, %v1151, %v1153
        %v1187 = vsel %vm1091, %v1153, 0.0
        %vm1188 = vcmp.eq.s32.totalorder %v640, 15
        %vm1189 = vcmp.eq.s32.totalorder %v641, 15
        %vm1190 = vcmp.eq.s32.totalorder %v642, 15
        %vm1191 = vcmp.eq.s32.totalorder %v643, 15
        %vm1192 = vcmp.eq.s32.totalorder %v644, 15
        %vm1193 = vcmp.eq.s32.totalorder %v645, 15
        %vm1194 = vcmp.eq.s32.totalorder %v646, 15
        %vm1195 = vcmp.eq.s32.totalorder %v647, 15
        %vm1196 = vcmp.eq.s32.totalorder %v648, 15
        %vm1197 = vcmp.eq.s32.totalorder %v649, 15
        %vm1198 = vcmp.eq.s32.totalorder %v650, 15
        %vm1199 = vcmp.eq.s32.totalorder %v651, 15
        %vm1200 = vcmp.eq.s32.totalorder %v652, 15
        %vm1201 = vcmp.eq.s32.totalorder %v653, 15
        %vm1202 = vcmp.eq.s32.totalorder %v654, 15
        %vm1203 = vcmp.eq.s32.totalorder %v655, 15
        %vm1204 = vcmp.eq.s32.totalorder %v656, 15
        %vm1205 = vcmp.eq.s32.totalorder %v657, 15
        %vm1206 = vcmp.eq.s32.totalorder %v658, 15
        %vm1207 = vcmp.eq.s32.totalorder %v659, 15
        %vm1208 = vcmp.eq.s32.totalorder %v660, 15
        %vm1209 = vcmp.eq.s32.totalorder %v661, 15
        %vm1210 = vcmp.eq.s32.totalorder %v662, 15
        %vm1211 = vcmp.eq.s32.totalorder %v663, 15
        %vm1212 = vcmp.eq.s32.totalorder %v664, 15
        %vm1213 = vcmp.eq.s32.totalorder %v665, 15
        %vm1214 = vcmp.eq.s32.totalorder %v666, 15
        %vm1215 = vcmp.eq.s32.totalorder %v667, 15
        %vm1216 = vcmp.eq.s32.totalorder %v668, 15
        %vm1217 = vcmp.eq.s32.totalorder %v669, 15
        %vm1218 = vcmp.eq.s32.totalorder %v670, 15
        %vm1219 = vcmp.eq.s32.totalorder %v671, 15
        %v1220 = vsel %vm1188, 1, 0
        %v1221 = vsel %vm1189, 1, 0
        %v1222 = vsel %vm1190, 1, 0
        %v1223 = vsel %vm1191, 1, 0
        %v1224 = vsel %vm1192, 1, 0
        %v1225 = vsel %vm1193, 1, 0
        %v1226 = vsel %vm1194, 1, 0
        %v1227 = vsel %vm1195, 1, 0
        %v1228 = vsel %vm1196, 1, 0
        %v1229 = vsel %vm1197, 1, 0
        %v1230 = vsel %vm1198, 1, 0
        %v1231 = vsel %vm1199, 1, 0
        %v1232 = vsel %vm1200, 1, 0
        %v1233 = vsel %vm1201, 1, 0
        %v1234 = vsel %vm1202, 1, 0
        %v1235 = vsel %vm1203, 1, 0
        %v1236 = vsel %vm1204, 1, 0
        %v1237 = vsel %vm1205, 1, 0
        %v1238 = vsel %vm1206, 1, 0
        %v1239 = vsel %vm1207, 1, 0
        %v1240 = vsel %vm1208, 1, 0
        %v1241 = vsel %vm1209, 1, 0
        %v1242 = vsel %vm1210, 1, 0
        %v1243 = vsel %vm1211, 1, 0
        %v1244 = vsel %vm1212, 1, 0
        %v1245 = vsel %vm1213, 1, 0
        %v1246 = vsel %vm1214, 1, 0
        %v1247 = vsel %vm1215, 1, 0
        %v1248 = vsel %vm1216, 1, 0
        %v1249 = vsel %vm1217, 1, 0
        %v1250 = vsel %vm1218, 1, 0
        %v1251 = vsel %vm1219, 1, 0
        %vm1252 = vcmp.eq.s32.totalorder %v1220, 1
        %vm1253 = vcmp.eq.s32.totalorder %v1221, 1
        %vm1254 = vcmp.eq.s32.totalorder %v1222, 1
        %vm1255 = vcmp.eq.s32.totalorder %v1223, 1
        %vm1256 = vcmp.eq.s32.totalorder %v1224, 1
        %vm1257 = vcmp.eq.s32.totalorder %v1225, 1
        %vm1258 = vcmp.eq.s32.totalorder %v1226, 1
        %vm1259 = vcmp.eq.s32.totalorder %v1227, 1
        %vm1260 = vcmp.eq.s32.totalorder %v1228, 1
        %vm1261 = vcmp.eq.s32.totalorder %v1229, 1
        %vm1262 = vcmp.eq.s32.totalorder %v1230, 1
        %vm1263 = vcmp.eq.s32.totalorder %v1231, 1
        %vm1264 = vcmp.eq.s32.totalorder %v1232, 1
        %vm1265 = vcmp.eq.s32.totalorder %v1233, 1
        %vm1266 = vcmp.eq.s32.totalorder %v1234, 1
        %vm1267 = vcmp.eq.s32.totalorder %v1235, 1
        %vm1268 = vcmp.eq.s32.totalorder %v1236, 1
        %vm1269 = vcmp.eq.s32.totalorder %v1237, 1
        %vm1270 = vcmp.eq.s32.totalorder %v1238, 1
        %vm1271 = vcmp.eq.s32.totalorder %v1239, 1
        %vm1272 = vcmp.eq.s32.totalorder %v1240, 1
        %vm1273 = vcmp.eq.s32.totalorder %v1241, 1
        %vm1274 = vcmp.eq.s32.totalorder %v1242, 1
        %vm1275 = vcmp.eq.s32.totalorder %v1243, 1
        %vm1276 = vcmp.eq.s32.totalorder %v1244, 1
        %vm1277 = vcmp.eq.s32.totalorder %v1245, 1
        %vm1278 = vcmp.eq.s32.totalorder %v1246, 1
        %vm1279 = vcmp.eq.s32.totalorder %v1247, 1
        %vm1280 = vcmp.eq.s32.totalorder %v1248, 1
        %vm1281 = vcmp.eq.s32.totalorder %v1249, 1
        %vm1282 = vcmp.eq.s32.totalorder %v1250, 1
        %vm1283 = vcmp.eq.s32.totalorder %v1251, 1
        %v1284 = vsel %vm1252, 0.0, %v1094
        %v1285 = vsel %vm1253, 0.0, %v1096
        %v1286 = vsel %vm1254, 0.0, %v1098
        %v1287 = vsel %vm1255, 0.0, %v1100
        %v1288 = vsel %vm1256, 0.0, %v1102
        %v1289 = vsel %vm1257, 0.0, %v1104
        %v1290 = vsel %vm1258, 0.0, %v1106
        %v1291 = vsel %vm1259, 0.0, %v1108
        %v1292 = vsel %vm1260, 0.0, %v1110
        %v1293 = vsel %vm1261, 0.0, %v1112
        %v1294 = vsel %vm1262, 0.0, %v1114
        %v1295 = vsel %vm1263, 0.0, %v1116
        %v1296 = vsel %vm1264, 0.0, %v1118
        %v1297 = vsel %vm1265, 0.0, %v1120
        %v1298 = vsel %vm1266, 0.0, %v1122
        %v1299 = vsel %vm1267, 0.0, %v1124
        %v1300 = vsel %vm1268, 0.0, %v1126
        %v1301 = vsel %vm1269, 0.0, %v1128
        %v1302 = vsel %vm1270, 0.0, %v1130
        %v1303 = vsel %vm1271, 0.0, %v1132
        %v1304 = vsel %vm1272, 0.0, %v1134
        %v1305 = vsel %vm1273, 0.0, %v1136
        %v1306 = vsel %vm1274, 0.0, %v1138
        %v1307 = vsel %vm1275, 0.0, %v1140
        %v1308 = vsel %vm1276, 0.0, %v1142
        %v1309 = vsel %vm1277, 0.0, %v1144
        %v1310 = vsel %vm1278, 0.0, %v1146
        %v1311 = vsel %vm1279, 0.0, %v1148
        %v1312 = vsel %vm1280, 0.0, %v1150
        %v1313 = vsel %vm1281, 0.0, %v1152
        %v1314 = vsel %vm1282, 0.0, %v1154
        %v1315 = vsel %vm1283, 0.0, %v1187
        %1348 = vrot.lane.b32.xlu0 %v1284, 8
        %v1349 = vpop.permute.xlu0 %1348
        %1350 = vrot.lane.b32.xlu0 %v1285, 8
        %v1351 = vpop.permute.xlu0 %1350
        %1352 = vrot.lane.b32.xlu0 %v1286, 8
        %v1353 = vpop.permute.xlu0 %1352
        %1354 = vrot.lane.b32.xlu0 %v1287, 8
        %v1355 = vpop.permute.xlu0 %1354
        %1356 = vrot.lane.b32.xlu0 %v1288, 8
        %v1357 = vpop.permute.xlu0 %1356
        %1358 = vrot.lane.b32.xlu0 %v1289, 8
        %v1359 = vpop.permute.xlu0 %1358
        %1360 = vrot.lane.b32.xlu0 %v1290, 8
        %v1361 = vpop.permute.xlu0 %1360
        %1362 = vrot.lane.b32.xlu0 %v1291, 8
        %v1363 = vpop.permute.xlu0 %1362
        %1364 = vrot.lane.b32.xlu0 %v1292, 8
        %v1365 = vpop.permute.xlu0 %1364
        %1366 = vrot.lane.b32.xlu0 %v1293, 8
        %v1367 = vpop.permute.xlu0 %1366
        %1368 = vrot.lane.b32.xlu0 %v1294, 8
        %v1369 = vpop.permute.xlu0 %1368
        %1370 = vrot.lane.b32.xlu0 %v1295, 8
        %v1371 = vpop.permute.xlu0 %1370
        %1372 = vrot.lane.b32.xlu0 %v1296, 8
        %v1373 = vpop.permute.xlu0 %1372
        %1374 = vrot.lane.b32.xlu0 %v1297, 8
        %v1375 = vpop.permute.xlu0 %1374
        %1376 = vrot.lane.b32.xlu0 %v1298, 8
        %v1377 = vpop.permute.xlu0 %1376
        %1378 = vrot.lane.b32.xlu0 %v1299, 8
        %v1379 = vpop.permute.xlu0 %1378
        %1380 = vrot.lane.b32.xlu0 %v1300, 8
        %v1381 = vpop.permute.xlu0 %1380
        %1382 = vrot.lane.b32.xlu0 %v1301, 8
        %v1383 = vpop.permute.xlu0 %1382
        %1384 = vrot.lane.b32.xlu0 %v1302, 8
        %v1385 = vpop.permute.xlu0 %1384
        %1386 = vrot.lane.b32.xlu0 %v1303, 8
        %v1387 = vpop.permute.xlu0 %1386
        %1388 = vrot.lane.b32.xlu0 %v1304, 8
        %v1389 = vpop.permute.xlu0 %1388
        %1390 = vrot.lane.b32.xlu0 %v1305, 8
        %v1391 = vpop.permute.xlu0 %1390
        %1392 = vrot.lane.b32.xlu0 %v1306, 8
        %v1393 = vpop.permute.xlu0 %1392
        %1394 = vrot.lane.b32.xlu0 %v1307, 8
        %v1395 = vpop.permute.xlu0 %1394
        %1396 = vrot.lane.b32.xlu0 %v1308, 8
        %v1397 = vpop.permute.xlu0 %1396
        %1398 = vrot.lane.b32.xlu0 %v1309, 8
        %v1399 = vpop.permute.xlu0 %1398
        %1400 = vrot.lane.b32.xlu0 %v1310, 8
        %v1401 = vpop.permute.xlu0 %1400
        %1402 = vrot.lane.b32.xlu0 %v1311, 8
        %v1403 = vpop.permute.xlu0 %1402
        %1404 = vrot.lane.b32.xlu0 %v1312, 8
        %v1405 = vpop.permute.xlu0 %1404
        %1406 = vrot.lane.b32.xlu0 %v1313, 8
        %v1407 = vpop.permute.xlu0 %1406
        %1408 = vrot.lane.b32.xlu0 %v1314, 8
        %v1409 = vpop.permute.xlu0 %1408
        %1410 = vrot.lane.b32.xlu0 %v1315, 8
        %v1411 = vpop.permute.xlu0 %1410
        %vm1444 = vcmask 97344
        %1445 = vst.msk [vmem:[#allocation2 + $0x10] sm:$0xff] %vm1444, %v1349
        %1446 = vst.msk [vmem:[#allocation2 + $0x18] sm:$0xff] %vm1444, %v1351
        %1447 = vst.msk [vmem:[#allocation2 + $0x20] sm:$0xff] %vm1444, %v1353
        %1448 = vst.msk [vmem:[#allocation2 + $0x28] sm:$0xff] %vm1444, %v1355
        %1449 = vst.msk [vmem:[#allocation2 + $0x30] sm:$0xff] %vm1444, %v1357
        %1450 = vst.msk [vmem:[#allocation2 + $0x38] sm:$0xff] %vm1444, %v1359
        %1451 = vst.msk [vmem:[#allocation2 + $0x40] sm:$0xff] %vm1444, %v1361
        %1452 = vst.msk [vmem:[#allocation2 + $0x48] sm:$0xff] %vm1444, %v1363
        %1453 = vst.msk [vmem:[#allocation2 + $0x50] sm:$0xff] %vm1444, %v1365
        %1454 = vst.msk [vmem:[#allocation2 + $0x58] sm:$0xff] %vm1444, %v1367
        %1455 = vst.msk [vmem:[#allocation2 + $0x60] sm:$0xff] %vm1444, %v1369
        %1456 = vst.msk [vmem:[#allocation2 + $0x68] sm:$0xff] %vm1444, %v1371
        %1457 = vst.msk [vmem:[#allocation2 + $0x70] sm:$0xff] %vm1444, %v1373
        %1458 = vst.msk [vmem:[#allocation2 + $0x78] sm:$0xff] %vm1444, %v1375
        %1459 = vst.msk [vmem:[#allocation2 + $0x80] sm:$0xff] %vm1444, %v1377
        %1460 = vst.msk [vmem:[#allocation2 + $0x88] sm:$0xff] %vm1444, %v1379
        %1461 = vst.msk [vmem:[#allocation2 + $0x90] sm:$0xff] %vm1444, %v1381
        %1462 = vst.msk [vmem:[#allocation2 + $0x98] sm:$0xff] %vm1444, %v1383
        %1463 = vst.msk [vmem:[#allocation2 + $0xa0] sm:$0xff] %vm1444, %v1385
        %1464 = vst.msk [vmem:[#allocation2 + $0xa8] sm:$0xff] %vm1444, %v1387
        %1465 = vst.msk [vmem:[#allocation2 + $0xb0] sm:$0xff] %vm1444, %v1389
        %1466 = vst.msk [vmem:[#allocation2 + $0xb8] sm:$0xff] %vm1444, %v1391
        %1467 = vst.msk [vmem:[#allocation2 + $0xc0] sm:$0xff] %vm1444, %v1393
        %1468 = vst.msk [vmem:[#allocation2 + $0xc8] sm:$0xff] %vm1444, %v1395
        %1469 = vst.msk [vmem:[#allocation2 + $0xd0] sm:$0xff] %vm1444, %v1397
        %1470 = vst.msk [vmem:[#allocation2 + $0xd8] sm:$0xff] %vm1444, %v1399
        %1471 = vst.msk [vmem:[#allocation2 + $0xe0] sm:$0xff] %vm1444, %v1401
        %1472 = vst.msk [vmem:[#allocation2 + $0xe8] sm:$0xff] %vm1444, %v1403
        %1473 = vst.msk [vmem:[#allocation2 + $0xf0] sm:$0xff] %vm1444, %v1405
        %1474 = vst.msk [vmem:[#allocation2 + $0xf8] sm:$0xff] %vm1444, %v1407
        %1475 = vst.msk [vmem:[#allocation2 + $0x100] sm:$0xff] %vm1444, %v1409
        %1476 = vst.msk [vmem:[#allocation2 + $0x108] sm:$0xff] %vm1444, %v1411
        %v1477 = vld [vmem:[#allocation2] sm:$0xff]
        %v1478 = vld [vmem:[#allocation2 + $0x8] sm:$0xff]
        %v1479 = vld [vmem:[#allocation2 + $0x10] sm:$0xff]
        %v1480 = vld [vmem:[#allocation2 + $0x18] sm:$0xff]
        %v1481 = vld [vmem:[#allocation2 + $0x20] sm:$0xff]
        %v1482 = vld [vmem:[#allocation2 + $0x28] sm:$0xff]
        %v1483 = vld [vmem:[#allocation2 + $0x30] sm:$0xff]
        %v1484 = vld [vmem:[#allocation2 + $0x38] sm:$0xff]
        %v1485 = vld [vmem:[#allocation2 + $0x40] sm:$0xff]
        %v1486 = vld [vmem:[#allocation2 + $0x48] sm:$0xff]
        %v1487 = vld [vmem:[#allocation2 + $0x50] sm:$0xff]
        %v1488 = vld [vmem:[#allocation2 + $0x58] sm:$0xff]
        %v1489 = vld [vmem:[#allocation2 + $0x60] sm:$0xff]
        %v1490 = vld [vmem:[#allocation2 + $0x68] sm:$0xff]
        %v1491 = vld [vmem:[#allocation2 + $0x70] sm:$0xff]
        %v1492 = vld [vmem:[#allocation2 + $0x78] sm:$0xff]
        %v1493 = vld [vmem:[#allocation2 + $0x80] sm:$0xff]
        %v1494 = vld [vmem:[#allocation2 + $0x88] sm:$0xff]
        %v1495 = vld [vmem:[#allocation2 + $0x90] sm:$0xff]
        %v1496 = vld [vmem:[#allocation2 + $0x98] sm:$0xff]
        %v1497 = vld [vmem:[#allocation2 + $0xa0] sm:$0xff]
        %v1498 = vld [vmem:[#allocation2 + $0xa8] sm:$0xff]
        %v1499 = vld [vmem:[#allocation2 + $0xb0] sm:$0xff]
        %v1500 = vld [vmem:[#allocation2 + $0xb8] sm:$0xff]
        %v1501 = vld [vmem:[#allocation2 + $0xc0] sm:$0xff]
        %v1502 = vld [vmem:[#allocation2 + $0xc8] sm:$0xff]
        %v1503 = vld [vmem:[#allocation2 + $0xd0] sm:$0xff]
        %v1504 = vld [vmem:[#allocation2 + $0xd8] sm:$0xff]
        %v1505 = vld [vmem:[#allocation2 + $0xe0] sm:$0xff]
        %v1506 = vld [vmem:[#allocation2 + $0xe8] sm:$0xff]
        %v1507 = vld [vmem:[#allocation2 + $0xf0] sm:$0xff]
        %v1508 = vld [vmem:[#allocation2 + $0xf8] sm:$0xff]
        %v1509 = vld [vmem:[%s1] sm:$0xff]
        %v1510 = vld [vmem:[%s1 + $0x8] sm:$0xf]
        %s1511 = scalar_lea.vmem [#allocation2], 16
        %v1512 = vld [vmem:[%s1511] sm:$0xff]
        %v1513 = vld [vmem:[%s1511 + $0x8] sm:$0xff]
        %v1514 = vld [vmem:[%s1511 + $0x10] sm:$0xff]
        %v1515 = vld [vmem:[%s1511 + $0x18] sm:$0xff]
        %v1516 = vld [vmem:[%s1511 + $0x20] sm:$0xff]
        %v1517 = vld [vmem:[%s1511 + $0x28] sm:$0xff]
        %v1518 = vld [vmem:[%s1511 + $0x30] sm:$0xff]
        %v1519 = vld [vmem:[%s1511 + $0x38] sm:$0xff]
        %v1520 = vld [vmem:[%s1511 + $0x40] sm:$0xff]
        %v1521 = vld [vmem:[%s1511 + $0x48] sm:$0xff]
        %v1522 = vld [vmem:[%s1511 + $0x50] sm:$0xff]
        %v1523 = vld [vmem:[%s1511 + $0x58] sm:$0xff]
        %v1524 = vld [vmem:[%s1511 + $0x60] sm:$0xff]
        %v1525 = vld [vmem:[%s1511 + $0x68] sm:$0xff]
        %v1526 = vld [vmem:[%s1511 + $0x70] sm:$0xff]
        %v1527 = vld [vmem:[%s1511 + $0x78] sm:$0xff]
        %v1528 = vld [vmem:[%s1511 + $0x80] sm:$0xff]
        %v1529 = vld [vmem:[%s1511 + $0x88] sm:$0xff]
        %v1530 = vld [vmem:[%s1511 + $0x90] sm:$0xff]
        %v1531 = vld [vmem:[%s1511 + $0x98] sm:$0xff]
        %v1532 = vld [vmem:[%s1511 + $0xa0] sm:$0xff]
        %v1533 = vld [vmem:[%s1511 + $0xa8] sm:$0xff]
        %v1534 = vld [vmem:[%s1511 + $0xb0] sm:$0xff]
        %v1535 = vld [vmem:[%s1511 + $0xb8] sm:$0xff]
        %v1536 = vld [vmem:[%s1511 + $0xc0] sm:$0xff]
        %v1537 = vld [vmem:[%s1511 + $0xc8] sm:$0xff]
        %v1538 = vld [vmem:[%s1511 + $0xd0] sm:$0xff]
        %v1539 = vld [vmem:[%s1511 + $0xd8] sm:$0xff]
        %v1540 = vld [vmem:[%s1511 + $0xe0] sm:$0xff]
        %v1541 = vld [vmem:[%s1511 + $0xe8] sm:$0xff]
        %v1542 = vld [vmem:[%s1511 + $0xf0] sm:$0xff]
        %v1543 = vld [vmem:[%s1511 + $0xf8] sm:$0xff]
        %v1544 = vld [vmem:[%s1 + $0xc] sm:$0xff]
        %v1545 = vld [vmem:[%s1 + $0x14] sm:$0xf]
        %v1547 = vsel %vm250, %v1512, 0
        %v1550 = vsel %vm250, %v1513, 0
        %v1553 = vsel %vm250, %v1514, 0
        %v1556 = vsel %vm250, %v1515, 0
        %v1559 = vsel %vm250, %v1516, 0
        %v1562 = vsel %vm250, %v1517, 0
        %v1565 = vsel %vm250, %v1518, 0
        %v1568 = vsel %vm250, %v1519, 0
        %v1571 = vsel %vm250, %v1520, 0
        %v1574 = vsel %vm250, %v1521, 0
        %v1577 = vsel %vm250, %v1522, 0
        %v1580 = vsel %vm250, %v1523, 0
        %v1583 = vsel %vm250, %v1524, 0
        %v1586 = vsel %vm250, %v1525, 0
        %v1589 = vsel %vm250, %v1526, 0
        %v1592 = vsel %vm250, %v1527, 0
        %v1595 = vsel %vm250, %v1528, 0
        %v1598 = vsel %vm250, %v1529, 0
        %v1601 = vsel %vm250, %v1530, 0
        %v1604 = vsel %vm250, %v1531, 0
        %v1607 = vsel %vm250, %v1532, 0
        %v1610 = vsel %vm250, %v1533, 0
        %v1613 = vsel %vm250, %v1534, 0
        %v1616 = vsel %vm250, %v1535, 0
        %v1619 = vsel %vm250, %v1536, 0
        %v1622 = vsel %vm250, %v1537, 0
        %v1625 = vsel %vm250, %v1538, 0
        %v1628 = vsel %vm250, %v1539, 0
        %v1631 = vsel %vm250, %v1540, 0
        %v1634 = vsel %vm250, %v1541, 0
        %v1637 = vsel %vm250, %v1542, 0
        %v1640 = vsel %vm250, %v1543, 0
        %vm1642 = vcmask 1043456
        %v1644 = vsel %vm1642, %v1545, 0
        %1646 = vmatprep.subr.mxu0 0.0
        %1647 = vmatpush1.msra.mxu0 0.0
        %1648 = vmatprep.subr.mxu0 0.0
        %1649 = vmatpush1.msra.mxu0 0.0
        %1650 = vmatprep.subr.mxu0 0.0
        %1651 = vmatpush1.msra.mxu0 0.0
        %1652 = vmatprep.subr.mxu0 0.0
        %1653 = vmatpush1.msra.mxu0 0.0
        %1654 = vmatprep.subr.mxu0 0.0
        %1655 = vmatpush1.msra.mxu0 0.0
        %1656 = vmatprep.subr.mxu0 0.0
        %1657 = vmatpush1.msra.mxu0 0.0
        %1658 = vmatprep.subr.mxu0 0.0
        %1659 = vmatpush1.msra.mxu0 0.0
        %1660 = vmatprep.subr.mxu0 0.0
        %1661 = vmatpush1.msra.mxu0 0.0
        %1662 = vmatprep.subr.mxu0 0.0
        %1663 = vmatpush1.msra.mxu0 0.0
        %1664 = vmatprep.subr.mxu0 0.0
        %1665 = vmatpush1.msra.mxu0 0.0
        %1666 = vmatprep.subr.mxu0 0.0
        %1667 = vmatpush1.msra.mxu0 0.0
        %1668 = vmatprep.subr.mxu0 0.0
        %1669 = vmatpush1.msra.mxu0 0.0
        %1670 = vmatprep.subr.mxu0 0.0
        %1671 = vmatpush1.msra.mxu0 0.0
        %1672 = vmatprep.subr.mxu0 0.0
        %1673 = vmatpush1.msra.mxu0 0.0
        %1674 = vmatprep.subr.mxu0 0.0
        %1675 = vmatpush1.msra.mxu0 %v1644
        %1676 = vmatprep.subr.mxu0 0.0
        %1677 = vmatpush1.msra.mxu0 %v1544
        %1678 = vmatprep.subr.mxu0 0.0
        %1679 = vmatpush2.msra.mxu0 0.0
        %1680 = vmatprep.subr.mxu0 0.0
        %1681 = vmatpush2.msra.mxu0 0.0
        %1682 = vmatprep.subr.mxu0 0.0
        %1683 = vmatpush2.msra.mxu0 0.0
        %1684 = vmatprep.subr.mxu0 0.0
        %1685 = vmatpush2.msra.mxu0 0.0
        %1686 = vmatprep.subr.mxu0 0.0
        %1687 = vmatpush2.msra.mxu0 0.0
        %1688 = vmatprep.subr.mxu0 0.0
        %1689 = vmatpush2.msra.mxu0 0.0
        %1690 = vmatprep.subr.mxu0 0.0
        %1691 = vmatpush2.msra.mxu0 0.0
        %1692 = vmatprep.subr.mxu0 0.0
        %1693 = vmatpush2.msra.mxu0 0.0
        %1694 = vmatprep.subr.mxu0 0.0
        %1695 = vmatpush2.msra.mxu0 0.0
        %1696 = vmatprep.subr.mxu0 0.0
        %1697 = vmatpush2.msra.mxu0 0.0
        %1698 = vmatprep.subr.mxu0 0.0
        %1699 = vmatpush2.msra.mxu0 0.0
        %1700 = vmatprep.subr.mxu0 0.0
        %1701 = vmatpush2.msra.mxu0 0.0
        %1702 = vmatprep.subr.mxu0 0.0
        %1703 = vmatpush2.msra.mxu0 0.0
        %1704 = vmatprep.subr.mxu0 0.0
        %1705 = vmatpush2.msra.mxu0 0.0
        %1706 = vmatprep.subr.mxu0 0.0
        %1707 = vmatpush2.msra.mxu0 0.0
        %1708 = vmatprep.subr.mxu0 0.0
        %1709 = vmatpush2.msra.mxu0 0.0
        %1710 = vmatprep.mubr.f32.mxu0 0.0
        %1711 = vmatmul.mubr.f32.gmra.mxu0 %v1547
        %v1712 = vpop.f32.mrf.mxu0
        %v1713 = vadd.f32 0.0, %v1712
        %v1714 = vpop.f32.mrf.mxu0
        %1715 = vmatprep.mubr.f32.mxu0 0.0
        %1716 = vmatmul.mubr.f32.gmra.mxu0 %v1550
        %v1717 = vpop.f32.mrf.mxu0
        %v1718 = vadd.f32 0.0, %v1717
        %v1719 = vpop.f32.mrf.mxu0
        %1720 = vmatprep.mubr.f32.mxu0 0.0
        %1721 = vmatmul.mubr.f32.gmra.mxu0 %v1553
        %v1722 = vpop.f32.mrf.mxu0
        %v1723 = vadd.f32 0.0, %v1722
        %v1724 = vpop.f32.mrf.mxu0
        %1725 = vmatprep.mubr.f32.mxu0 0.0
        %1726 = vmatmul.mubr.f32.gmra.mxu0 %v1556
        %v1727 = vpop.f32.mrf.mxu0
        %v1728 = vadd.f32 0.0, %v1727
        %v1729 = vpop.f32.mrf.mxu0
        %1730 = vmatprep.mubr.f32.mxu0 0.0
        %1731 = vmatmul.mubr.f32.gmra.mxu0 %v1559
        %v1732 = vpop.f32.mrf.mxu0
        %v1733 = vadd.f32 0.0, %v1732
        %v1734 = vpop.f32.mrf.mxu0
        %1735 = vmatprep.mubr.f32.mxu0 0.0
        %1736 = vmatmul.mubr.f32.gmra.mxu0 %v1562
        %v1737 = vpop.f32.mrf.mxu0
        %v1738 = vadd.f32 0.0, %v1737
        %v1739 = vpop.f32.mrf.mxu0
        %1740 = vmatprep.mubr.f32.mxu0 0.0
        %1741 = vmatmul.mubr.f32.gmra.mxu0 %v1565
        %v1742 = vpop.f32.mrf.mxu0
        %v1743 = vadd.f32 0.0, %v1742
        %v1744 = vpop.f32.mrf.mxu0
        %1745 = vmatprep.mubr.f32.mxu0 0.0
        %1746 = vmatmul.mubr.f32.gmra.mxu0 %v1568
        %v1747 = vpop.f32.mrf.mxu0
        %v1748 = vadd.f32 0.0, %v1747
        %v1749 = vpop.f32.mrf.mxu0
        %1750 = vmatprep.mubr.f32.mxu0 0.0
        %1751 = vmatmul.mubr.f32.gmra.mxu0 %v1571
        %v1752 = vpop.f32.mrf.mxu0
        %v1753 = vadd.f32 0.0, %v1752
        %v1754 = vpop.f32.mrf.mxu0
        %1755 = vmatprep.mubr.f32.mxu0 0.0
        %1756 = vmatmul.mubr.f32.gmra.mxu0 %v1574
        %v1757 = vpop.f32.mrf.mxu0
        %v1758 = vadd.f32 0.0, %v1757
        %v1759 = vpop.f32.mrf.mxu0
        %1760 = vmatprep.mubr.f32.mxu0 0.0
        %1761 = vmatmul.mubr.f32.gmra.mxu0 %v1577
        %v1762 = vpop.f32.mrf.mxu0
        %v1763 = vadd.f32 0.0, %v1762
        %v1764 = vpop.f32.mrf.mxu0
        %1765 = vmatprep.mubr.f32.mxu0 0.0
        %1766 = vmatmul.mubr.f32.gmra.mxu0 %v1580
        %v1767 = vpop.f32.mrf.mxu0
        %v1768 = vadd.f32 0.0, %v1767
        %v1769 = vpop.f32.mrf.mxu0
        %1770 = vmatprep.mubr.f32.mxu0 0.0
        %1771 = vmatmul.mubr.f32.gmra.mxu0 %v1583
        %v1772 = vpop.f32.mrf.mxu0
        %v1773 = vadd.f32 0.0, %v1772
        %v1774 = vpop.f32.mrf.mxu0
        %1775 = vmatprep.mubr.f32.mxu0 0.0
        %1776 = vmatmul.mubr.f32.gmra.mxu0 %v1586
        %v1777 = vpop.f32.mrf.mxu0
        %v1778 = vadd.f32 0.0, %v1777
        %v1779 = vpop.f32.mrf.mxu0
        %1780 = vmatprep.mubr.f32.mxu0 0.0
        %1781 = vmatmul.mubr.f32.gmra.mxu0 %v1589
        %v1782 = vpop.f32.mrf.mxu0
        %v1783 = vadd.f32 0.0, %v1782
        %v1784 = vpop.f32.mrf.mxu0
        %1785 = vmatprep.mubr.f32.mxu0 0.0
        %1786 = vmatmul.mubr.f32.gmra.mxu0 %v1592
        %v1787 = vpop.f32.mrf.mxu0
        %v1788 = vadd.f32 0.0, %v1787
        %v1789 = vpop.f32.mrf.mxu0
        %1790 = vmatprep.mubr.f32.mxu0 0.0
        %1791 = vmatmul.mubr.f32.gmra.mxu0 %v1595
        %v1792 = vpop.f32.mrf.mxu0
        %v1793 = vadd.f32 0.0, %v1792
        %v1794 = vpop.f32.mrf.mxu0
        %1795 = vmatprep.mubr.f32.mxu0 0.0
        %1796 = vmatmul.mubr.f32.gmra.mxu0 %v1598
        %v1797 = vpop.f32.mrf.mxu0
        %v1798 = vadd.f32 0.0, %v1797
        %v1799 = vpop.f32.mrf.mxu0
        %1800 = vmatprep.mubr.f32.mxu0 0.0
        %1801 = vmatmul.mubr.f32.gmra.mxu0 %v1601
        %v1802 = vpop.f32.mrf.mxu0
        %v1803 = vadd.f32 0.0, %v1802
        %v1804 = vpop.f32.mrf.mxu0
        %1805 = vmatprep.mubr.f32.mxu0 0.0
        %1806 = vmatmul.mubr.f32.gmra.mxu0 %v1604
        %v1807 = vpop.f32.mrf.mxu0
        %v1808 = vadd.f32 0.0, %v1807
        %v1809 = vpop.f32.mrf.mxu0
        %1810 = vmatprep.mubr.f32.mxu0 0.0
        %1811 = vmatmul.mubr.f32.gmra.mxu0 %v1607
        %v1812 = vpop.f32.mrf.mxu0
        %v1813 = vadd.f32 0.0, %v1812
        %v1814 = vpop.f32.mrf.mxu0
        %1815 = vmatprep.mubr.f32.mxu0 0.0
        %1816 = vmatmul.mubr.f32.gmra.mxu0 %v1610
        %v1817 = vpop.f32.mrf.mxu0
        %v1818 = vadd.f32 0.0, %v1817
        %v1819 = vpop.f32.mrf.mxu0
        %1820 = vmatprep.mubr.f32.mxu0 0.0
        %1821 = vmatmul.mubr.f32.gmra.mxu0 %v1613
        %v1822 = vpop.f32.mrf.mxu0
        %v1823 = vadd.f32 0.0, %v1822
        %v1824 = vpop.f32.mrf.mxu0
        %1825 = vmatprep.mubr.f32.mxu0 0.0
        %1826 = vmatmul.mubr.f32.gmra.mxu0 %v1616
        %v1827 = vpop.f32.mrf.mxu0
        %v1828 = vadd.f32 0.0, %v1827
        %v1829 = vpop.f32.mrf.mxu0
        %1830 = vmatprep.mubr.f32.mxu0 0.0
        %1831 = vmatmul.mubr.f32.gmra.mxu0 %v1619
        %v1832 = vpop.f32.mrf.mxu0
        %v1833 = vadd.f32 0.0, %v1832
        %v1834 = vpop.f32.mrf.mxu0
        %1835 = vmatprep.mubr.f32.mxu0 0.0
        %1836 = vmatmul.mubr.f32.gmra.mxu0 %v1622
        %v1837 = vpop.f32.mrf.mxu0
        %v1838 = vadd.f32 0.0, %v1837
        %v1839 = vpop.f32.mrf.mxu0
        %1840 = vmatprep.mubr.f32.mxu0 0.0
        %1841 = vmatmul.mubr.f32.gmra.mxu0 %v1625
        %v1842 = vpop.f32.mrf.mxu0
        %v1843 = vadd.f32 0.0, %v1842
        %v1844 = vpop.f32.mrf.mxu0
        %1845 = vmatprep.mubr.f32.mxu0 0.0
        %1846 = vmatmul.mubr.f32.gmra.mxu0 %v1628
        %v1847 = vpop.f32.mrf.mxu0
        %v1848 = vadd.f32 0.0, %v1847
        %v1849 = vpop.f32.mrf.mxu0
        %1850 = vmatprep.mubr.f32.mxu0 0.0
        %1851 = vmatmul.mubr.f32.gmra.mxu0 %v1631
        %v1852 = vpop.f32.mrf.mxu0
        %v1853 = vadd.f32 0.0, %v1852
        %v1854 = vpop.f32.mrf.mxu0
        %1855 = vmatprep.mubr.f32.mxu0 0.0
        %1856 = vmatmul.mubr.f32.gmra.mxu0 %v1634
        %v1857 = vpop.f32.mrf.mxu0
        %v1858 = vadd.f32 0.0, %v1857
        %v1859 = vpop.f32.mrf.mxu0
        %1860 = vmatprep.mubr.f32.mxu0 0.0
        %1861 = vmatmul.mubr.f32.gmra.mxu0 %v1637
        %v1862 = vpop.f32.mrf.mxu0
        %v1863 = vadd.f32 0.0, %v1862
        %v1864 = vpop.f32.mrf.mxu0
        %1865 = vmatprep.mubr.f32.mxu0 0.0
        %1866 = vmatmul.mubr.f32.gmra.mxu0 %v1640
        %v1867 = vpop.f32.mrf.mxu0
        %v1868 = vadd.f32 0.0, %v1867
        %v1869 = vpop.f32.mrf.mxu0
        %1870 = vdwg.mxu0
        %v1872 = vsel %vm250, %v1477, 0
        %v1875 = vsel %vm250, %v1478, 0
        %v1878 = vsel %vm250, %v1479, 0
        %v1881 = vsel %vm250, %v1480, 0
        %v1884 = vsel %vm250, %v1481, 0
        %v1887 = vsel %vm250, %v1482, 0
        %v1890 = vsel %vm250, %v1483, 0
        %v1893 = vsel %vm250, %v1484, 0
        %v1896 = vsel %vm250, %v1485, 0
        %v1899 = vsel %vm250, %v1486, 0
        %v1902 = vsel %vm250, %v1487, 0
        %v1905 = vsel %vm250, %v1488, 0
        %v1908 = vsel %vm250, %v1489, 0
        %v1911 = vsel %vm250, %v1490, 0
        %v1914 = vsel %vm250, %v1491, 0
        %v1917 = vsel %vm250, %v1492, 0
        %v1920 = vsel %vm250, %v1493, 0
        %v1923 = vsel %vm250, %v1494, 0
        %v1926 = vsel %vm250, %v1495, 0
        %v1929 = vsel %vm250, %v1496, 0
        %v1932 = vsel %vm250, %v1497, 0
        %v1935 = vsel %vm250, %v1498, 0
        %v1938 = vsel %vm250, %v1499, 0
        %v1941 = vsel %vm250, %v1500, 0
        %v1944 = vsel %vm250, %v1501, 0
        %v1947 = vsel %vm250, %v1502, 0
        %v1950 = vsel %vm250, %v1503, 0
        %v1953 = vsel %vm250, %v1504, 0
        %v1956 = vsel %vm250, %v1505, 0
        %v1959 = vsel %vm250, %v1506, 0
        %v1962 = vsel %vm250, %v1507, 0
        %v1965 = vsel %vm250, %v1508, 0
        %v1968 = vsel %vm1642, %v1510, 0
        %1970 = vmatprep.subr.mxu0 0.0
        %1971 = vmatpush1.msra.mxu0 0.0
        %1972 = vmatprep.subr.mxu0 0.0
        %1973 = vmatpush1.msra.mxu0 0.0
        %1974 = vmatprep.subr.mxu0 0.0
        %1975 = vmatpush1.msra.mxu0 0.0
        %1976 = vmatprep.subr.mxu0 0.0
        %1977 = vmatpush1.msra.mxu0 0.0
        %1978 = vmatprep.subr.mxu0 0.0
        %1979 = vmatpush1.msra.mxu0 0.0
        %1980 = vmatprep.subr.mxu0 0.0
        %1981 = vmatpush1.msra.mxu0 0.0
        %1982 = vmatprep.subr.mxu0 0.0
        %1983 = vmatpush1.msra.mxu0 0.0
        %1984 = vmatprep.subr.mxu0 0.0
        %1985 = vmatpush1.msra.mxu0 0.0
        %1986 = vmatprep.subr.mxu0 0.0
        %1987 = vmatpush1.msra.mxu0 0.0
        %1988 = vmatprep.subr.mxu0 0.0
        %1989 = vmatpush1.msra.mxu0 0.0
        %1990 = vmatprep.subr.mxu0 0.0
        %1991 = vmatpush1.msra.mxu0 0.0
        %1992 = vmatprep.subr.mxu0 0.0
        %1993 = vmatpush1.msra.mxu0 0.0
        %1994 = vmatprep.subr.mxu0 0.0
        %1995 = vmatpush1.msra.mxu0 0.0
        %1996 = vmatprep.subr.mxu0 0.0
        %1997 = vmatpush1.msra.mxu0 0.0
        %1998 = vmatprep.subr.mxu0 0.0
        %1999 = vmatpush1.msra.mxu0 %v1968
        %2000 = vmatprep.subr.mxu0 0.0
        %2001 = vmatpush1.msra.mxu0 %v1509
        %2002 = vmatprep.subr.mxu0 0.0
        %2003 = vmatpush2.msra.mxu0 0.0
        %2004 = vmatprep.subr.mxu0 0.0
        %2005 = vmatpush2.msra.mxu0 0.0
        %2006 = vmatprep.subr.mxu0 0.0
        %2007 = vmatpush2.msra.mxu0 0.0
        %2008 = vmatprep.subr.mxu0 0.0
        %2009 = vmatpush2.msra.mxu0 0.0
        %2010 = vmatprep.subr.mxu0 0.0
        %2011 = vmatpush2.msra.mxu0 0.0
        %2012 = vmatprep.subr.mxu0 0.0
        %2013 = vmatpush2.msra.mxu0 0.0
        %2014 = vmatprep.subr.mxu0 0.0
        %2015 = vmatpush2.msra.mxu0 0.0
        %2016 = vmatprep.subr.mxu0 0.0
        %2017 = vmatpush2.msra.mxu0 0.0
        %2018 = vmatprep.subr.mxu0 0.0
        %2019 = vmatpush2.msra.mxu0 0.0
        %2020 = vmatprep.subr.mxu0 0.0
        %2021 = vmatpush2.msra.mxu0 0.0
        %2022 = vmatprep.subr.mxu0 0.0
        %2023 = vmatpush2.msra.mxu0 0.0
        %2024 = vmatprep.subr.mxu0 0.0
        %2025 = vmatpush2.msra.mxu0 0.0
        %2026 = vmatprep.subr.mxu0 0.0
        %2027 = vmatpush2.msra.mxu0 0.0
        %2028 = vmatprep.subr.mxu0 0.0
        %2029 = vmatpush2.msra.mxu0 0.0
        %2030 = vmatprep.subr.mxu0 0.0
        %2031 = vmatpush2.msra.mxu0 0.0
        %2032 = vmatprep.subr.mxu0 0.0
        %2033 = vmatpush2.msra.mxu0 0.0
        %2034 = vmatprep.mubr.f32.mxu0 0.0
        %2035 = vmatmul.mubr.f32.gmra.mxu0 %v1872
        %v2036 = vpop.f32.mrf.mxu0
        %v2037 = vadd.f32 %v1713, %v2036
        %v2038 = vpop.f32.mrf.mxu0
        %2039 = vmatprep.mubr.f32.mxu0 0.0
        %2040 = vmatmul.mubr.f32.gmra.mxu0 %v1875
        %v2041 = vpop.f32.mrf.mxu0
        %v2042 = vadd.f32 %v1718, %v2041
        %v2043 = vpop.f32.mrf.mxu0
        %2044 = vmatprep.mubr.f32.mxu0 0.0
        %2045 = vmatmul.mubr.f32.gmra.mxu0 %v1878
        %v2046 = vpop.f32.mrf.mxu0
        %v2047 = vadd.f32 %v1723, %v2046
        %v2048 = vpop.f32.mrf.mxu0
        %2049 = vmatprep.mubr.f32.mxu0 0.0
        %2050 = vmatmul.mubr.f32.gmra.mxu0 %v1881
        %v2051 = vpop.f32.mrf.mxu0
        %v2052 = vadd.f32 %v1728, %v2051
        %v2053 = vpop.f32.mrf.mxu0
        %2054 = vmatprep.mubr.f32.mxu0 0.0
        %2055 = vmatmul.mubr.f32.gmra.mxu0 %v1884
        %v2056 = vpop.f32.mrf.mxu0
        %v2057 = vadd.f32 %v1733, %v2056
        %v2058 = vpop.f32.mrf.mxu0
        %2059 = vmatprep.mubr.f32.mxu0 0.0
        %2060 = vmatmul.mubr.f32.gmra.mxu0 %v1887
        %v2061 = vpop.f32.mrf.mxu0
        %v2062 = vadd.f32 %v1738, %v2061
        %v2063 = vpop.f32.mrf.mxu0
        %2064 = vmatprep.mubr.f32.mxu0 0.0
        %2065 = vmatmul.mubr.f32.gmra.mxu0 %v1890
        %v2066 = vpop.f32.mrf.mxu0
        %v2067 = vadd.f32 %v1743, %v2066
        %v2068 = vpop.f32.mrf.mxu0
        %2069 = vmatprep.mubr.f32.mxu0 0.0
        %2070 = vmatmul.mubr.f32.gmra.mxu0 %v1893
        %v2071 = vpop.f32.mrf.mxu0
        %v2072 = vadd.f32 %v1748, %v2071
        %v2073 = vpop.f32.mrf.mxu0
        %2074 = vmatprep.mubr.f32.mxu0 0.0
        %2075 = vmatmul.mubr.f32.gmra.mxu0 %v1896
        %v2076 = vpop.f32.mrf.mxu0
        %v2077 = vadd.f32 %v1753, %v2076
        %v2078 = vpop.f32.mrf.mxu0
        %2079 = vmatprep.mubr.f32.mxu0 0.0
        %2080 = vmatmul.mubr.f32.gmra.mxu0 %v1899
        %v2081 = vpop.f32.mrf.mxu0
        %v2082 = vadd.f32 %v1758, %v2081
        %v2083 = vpop.f32.mrf.mxu0
        %2084 = vmatprep.mubr.f32.mxu0 0.0
        %2085 = vmatmul.mubr.f32.gmra.mxu0 %v1902
        %v2086 = vpop.f32.mrf.mxu0
        %v2087 = vadd.f32 %v1763, %v2086
        %v2088 = vpop.f32.mrf.mxu0
        %2089 = vmatprep.mubr.f32.mxu0 0.0
        %2090 = vmatmul.mubr.f32.gmra.mxu0 %v1905
        %v2091 = vpop.f32.mrf.mxu0
        %v2092 = vadd.f32 %v1768, %v2091
        %v2093 = vpop.f32.mrf.mxu0
        %2094 = vmatprep.mubr.f32.mxu0 0.0
        %2095 = vmatmul.mubr.f32.gmra.mxu0 %v1908
        %v2096 = vpop.f32.mrf.mxu0
        %v2097 = vadd.f32 %v1773, %v2096
        %v2098 = vpop.f32.mrf.mxu0
        %2099 = vmatprep.mubr.f32.mxu0 0.0
        %2100 = vmatmul.mubr.f32.gmra.mxu0 %v1911
        %v2101 = vpop.f32.mrf.mxu0
        %v2102 = vadd.f32 %v1778, %v2101
        %v2103 = vpop.f32.mrf.mxu0
        %2104 = vmatprep.mubr.f32.mxu0 0.0
        %2105 = vmatmul.mubr.f32.gmra.mxu0 %v1914
        %v2106 = vpop.f32.mrf.mxu0
        %v2107 = vadd.f32 %v1783, %v2106
        %v2108 = vpop.f32.mrf.mxu0
        %2109 = vmatprep.mubr.f32.mxu0 0.0
        %2110 = vmatmul.mubr.f32.gmra.mxu0 %v1917
        %v2111 = vpop.f32.mrf.mxu0
        %v2112 = vadd.f32 %v1788, %v2111
        %v2113 = vpop.f32.mrf.mxu0
        %2114 = vmatprep.mubr.f32.mxu0 0.0
        %2115 = vmatmul.mubr.f32.gmra.mxu0 %v1920
        %v2116 = vpop.f32.mrf.mxu0
        %v2117 = vadd.f32 %v1793, %v2116
        %v2118 = vpop.f32.mrf.mxu0
        %2119 = vmatprep.mubr.f32.mxu0 0.0
        %2120 = vmatmul.mubr.f32.gmra.mxu0 %v1923
        %v2121 = vpop.f32.mrf.mxu0
        %v2122 = vadd.f32 %v1798, %v2121
        %v2123 = vpop.f32.mrf.mxu0
        %2124 = vmatprep.mubr.f32.mxu0 0.0
        %2125 = vmatmul.mubr.f32.gmra.mxu0 %v1926
        %v2126 = vpop.f32.mrf.mxu0
        %v2127 = vadd.f32 %v1803, %v2126
        %v2128 = vpop.f32.mrf.mxu0
        %2129 = vmatprep.mubr.f32.mxu0 0.0
        %2130 = vmatmul.mubr.f32.gmra.mxu0 %v1929
        %v2131 = vpop.f32.mrf.mxu0
        %v2132 = vadd.f32 %v1808, %v2131
        %v2133 = vpop.f32.mrf.mxu0
        %2134 = vmatprep.mubr.f32.mxu0 0.0
        %2135 = vmatmul.mubr.f32.gmra.mxu0 %v1932
        %v2136 = vpop.f32.mrf.mxu0
        %v2137 = vadd.f32 %v1813, %v2136
        %v2138 = vpop.f32.mrf.mxu0
        %2139 = vmatprep.mubr.f32.mxu0 0.0
        %2140 = vmatmul.mubr.f32.gmra.mxu0 %v1935
        %v2141 = vpop.f32.mrf.mxu0
        %v2142 = vadd.f32 %v1818, %v2141
        %v2143 = vpop.f32.mrf.mxu0
        %2144 = vmatprep.mubr.f32.mxu0 0.0
        %2145 = vmatmul.mubr.f32.gmra.mxu0 %v1938
        %v2146 = vpop.f32.mrf.mxu0
        %v2147 = vadd.f32 %v1823, %v2146
        %v2148 = vpop.f32.mrf.mxu0
        %2149 = vmatprep.mubr.f32.mxu0 0.0
        %2150 = vmatmul.mubr.f32.gmra.mxu0 %v1941
        %v2151 = vpop.f32.mrf.mxu0
        %v2152 = vadd.f32 %v1828, %v2151
        %v2153 = vpop.f32.mrf.mxu0
        %2154 = vmatprep.mubr.f32.mxu0 0.0
        %2155 = vmatmul.mubr.f32.gmra.mxu0 %v1944
        %v2156 = vpop.f32.mrf.mxu0
        %v2157 = vadd.f32 %v1833, %v2156
        %v2158 = vpop.f32.mrf.mxu0
        %2159 = vmatprep.mubr.f32.mxu0 0.0
        %2160 = vmatmul.mubr.f32.gmra.mxu0 %v1947
        %v2161 = vpop.f32.mrf.mxu0
        %v2162 = vadd.f32 %v1838, %v2161
        %v2163 = vpop.f32.mrf.mxu0
        %2164 = vmatprep.mubr.f32.mxu0 0.0
        %2165 = vmatmul.mubr.f32.gmra.mxu0 %v1950
        %v2166 = vpop.f32.mrf.mxu0
        %v2167 = vadd.f32 %v1843, %v2166
        %v2168 = vpop.f32.mrf.mxu0
        %2169 = vmatprep.mubr.f32.mxu0 0.0
        %2170 = vmatmul.mubr.f32.gmra.mxu0 %v1953
        %v2171 = vpop.f32.mrf.mxu0
        %v2172 = vadd.f32 %v1848, %v2171
        %v2173 = vpop.f32.mrf.mxu0
        %2174 = vmatprep.mubr.f32.mxu0 0.0
        %2175 = vmatmul.mubr.f32.gmra.mxu0 %v1956
        %v2176 = vpop.f32.mrf.mxu0
        %v2177 = vadd.f32 %v1853, %v2176
        %v2178 = vpop.f32.mrf.mxu0
        %2179 = vmatprep.mubr.f32.mxu0 0.0
        %2180 = vmatmul.mubr.f32.gmra.mxu0 %v1959
        %v2181 = vpop.f32.mrf.mxu0
        %v2182 = vadd.f32 %v1858, %v2181
        %v2183 = vpop.f32.mrf.mxu0
        %2184 = vmatprep.mubr.f32.mxu0 0.0
        %2185 = vmatmul.mubr.f32.gmra.mxu0 %v1962
        %v2186 = vpop.f32.mrf.mxu0
        %v2187 = vadd.f32 %v1863, %v2186
        %v2188 = vpop.f32.mrf.mxu0
        %2189 = vmatprep.mubr.f32.mxu0 0.0
        %2190 = vmatmul.mubr.f32.gmra.mxu0 %v1965
        %v2191 = vpop.f32.mrf.mxu0
        %v2192 = vadd.f32 %v1868, %v2191
        %v2193 = vpop.f32.mrf.mxu0
        %2194 = vdwg.mxu0
        %s2195 = scalar_lea.vmem [#allocation2], 32
        %v2196 = vld [vmem:[%s2195] sm:$0xff]
        %v2197 = vld [vmem:[%s2195 + $0x8] sm:$0xff]
        %v2198 = vld [vmem:[%s2195 + $0x10] sm:$0xff]
        %v2199 = vld [vmem:[%s2195 + $0x18] sm:$0xff]
        %v2200 = vld [vmem:[%s2195 + $0x20] sm:$0xff]
        %v2201 = vld [vmem:[%s2195 + $0x28] sm:$0xff]
        %v2202 = vld [vmem:[%s2195 + $0x30] sm:$0xff]
        %v2203 = vld [vmem:[%s2195 + $0x38] sm:$0xff]
        %v2204 = vld [vmem:[%s2195 + $0x40] sm:$0xff]
        %v2205 = vld [vmem:[%s2195 + $0x48] sm:$0xff]
        %v2206 = vld [vmem:[%s2195 + $0x50] sm:$0xff]
        %v2207 = vld [vmem:[%s2195 + $0x58] sm:$0xff]
        %v2208 = vld [vmem:[%s2195 + $0x60] sm:$0xff]
        %v2209 = vld [vmem:[%s2195 + $0x68] sm:$0xff]
        %v2210 = vld [vmem:[%s2195 + $0x70] sm:$0xff]
        %v2211 = vld [vmem:[%s2195 + $0x78] sm:$0xff]
        %v2212 = vld [vmem:[%s2195 + $0x80] sm:$0xff]
        %v2213 = vld [vmem:[%s2195 + $0x88] sm:$0xff]
        %v2214 = vld [vmem:[%s2195 + $0x90] sm:$0xff]
        %v2215 = vld [vmem:[%s2195 + $0x98] sm:$0xff]
        %v2216 = vld [vmem:[%s2195 + $0xa0] sm:$0xff]
        %v2217 = vld [vmem:[%s2195 + $0xa8] sm:$0xff]
        %v2218 = vld [vmem:[%s2195 + $0xb0] sm:$0xff]
        %v2219 = vld [vmem:[%s2195 + $0xb8] sm:$0xff]
        %v2220 = vld [vmem:[%s2195 + $0xc0] sm:$0xff]
        %v2221 = vld [vmem:[%s2195 + $0xc8] sm:$0xff]
        %v2222 = vld [vmem:[%s2195 + $0xd0] sm:$0xff]
        %v2223 = vld [vmem:[%s2195 + $0xd8] sm:$0xff]
        %v2224 = vld [vmem:[%s2195 + $0xe0] sm:$0xff]
        %v2225 = vld [vmem:[%s2195 + $0xe8] sm:$0xff]
        %v2226 = vld [vmem:[%s2195 + $0xf0] sm:$0xff]
        %v2227 = vld [vmem:[%s2195 + $0xf8] sm:$0xff]
        %v2228 = vld [vmem:[%s1 + $0x18] sm:$0xff]
        %v2229 = vld [vmem:[%s1 + $0x20] sm:$0xf]
        %v2231 = vsel %vm250, %v2196, 0
        %v2234 = vsel %vm250, %v2197, 0
        %v2237 = vsel %vm250, %v2198, 0
        %v2240 = vsel %vm250, %v2199, 0
        %v2243 = vsel %vm250, %v2200, 0
        %v2246 = vsel %vm250, %v2201, 0
        %v2249 = vsel %vm250, %v2202, 0
        %v2252 = vsel %vm250, %v2203, 0
        %v2255 = vsel %vm250, %v2204, 0
        %v2258 = vsel %vm250, %v2205, 0
        %v2261 = vsel %vm250, %v2206, 0
        %v2264 = vsel %vm250, %v2207, 0
        %v2267 = vsel %vm250, %v2208, 0
        %v2270 = vsel %vm250, %v2209, 0
        %v2273 = vsel %vm250, %v2210, 0
        %v2276 = vsel %vm250, %v2211, 0
        %v2279 = vsel %vm250, %v2212, 0
        %v2282 = vsel %vm250, %v2213, 0
        %v2285 = vsel %vm250, %v2214, 0
        %v2288 = vsel %vm250, %v2215, 0
        %v2291 = vsel %vm250, %v2216, 0
        %v2294 = vsel %vm250, %v2217, 0
        %v2297 = vsel %vm250, %v2218, 0
        %v2300 = vsel %vm250, %v2219, 0
        %v2303 = vsel %vm250, %v2220, 0
        %v2306 = vsel %vm250, %v2221, 0
        %v2309 = vsel %vm250, %v2222, 0
        %v2312 = vsel %vm250, %v2223, 0
        %v2315 = vsel %vm250, %v2224, 0
        %v2318 = vsel %vm250, %v2225, 0
        %v2321 = vsel %vm250, %v2226, 0
        %v2324 = vsel %vm250, %v2227, 0
        %v2327 = vsel %vm1642, %v2229, 0
        %2329 = vmatprep.subr.mxu0 0.0
        %2330 = vmatpush1.msra.mxu0 0.0
        %2331 = vmatprep.subr.mxu0 0.0
        %2332 = vmatpush1.msra.mxu0 0.0
        %2333 = vmatprep.subr.mxu0 0.0
        %2334 = vmatpush1.msra.mxu0 0.0
        %2335 = vmatprep.subr.mxu0 0.0
        %2336 = vmatpush1.msra.mxu0 0.0
        %2337 = vmatprep.subr.mxu0 0.0
        %2338 = vmatpush1.msra.mxu0 0.0
        %2339 = vmatprep.subr.mxu0 0.0
        %2340 = vmatpush1.msra.mxu0 0.0
        %2341 = vmatprep.subr.mxu0 0.0
        %2342 = vmatpush1.msra.mxu0 0.0
        %2343 = vmatprep.subr.mxu0 0.0
        %2344 = vmatpush1.msra.mxu0 0.0
        %2345 = vmatprep.subr.mxu0 0.0
        %2346 = vmatpush1.msra.mxu0 0.0
        %2347 = vmatprep.subr.mxu0 0.0
        %2348 = vmatpush1.msra.mxu0 0.0
        %2349 = vmatprep.subr.mxu0 0.0
        %2350 = vmatpush1.msra.mxu0 0.0
        %2351 = vmatprep.subr.mxu0 0.0
        %2352 = vmatpush1.msra.mxu0 0.0
        %2353 = vmatprep.subr.mxu0 0.0
        %2354 = vmatpush1.msra.mxu0 0.0
        %2355 = vmatprep.subr.mxu0 0.0
        %2356 = vmatpush1.msra.mxu0 0.0
        %2357 = vmatprep.subr.mxu0 0.0
        %2358 = vmatpush1.msra.mxu0 %v2327
        %2359 = vmatprep.subr.mxu0 0.0
        %2360 = vmatpush1.msra.mxu0 %v2228
        %2361 = vmatprep.subr.mxu0 0.0
        %2362 = vmatpush2.msra.mxu0 0.0
        %2363 = vmatprep.subr.mxu0 0.0
        %2364 = vmatpush2.msra.mxu0 0.0
        %2365 = vmatprep.subr.mxu0 0.0
        %2366 = vmatpush2.msra.mxu0 0.0
        %2367 = vmatprep.subr.mxu0 0.0
        %2368 = vmatpush2.msra.mxu0 0.0
        %2369 = vmatprep.subr.mxu0 0.0
        %2370 = vmatpush2.msra.mxu0 0.0
        %2371 = vmatprep.subr.mxu0 0.0
        %2372 = vmatpush2.msra.mxu0 0.0
        %2373 = vmatprep.subr.mxu0 0.0
        %2374 = vmatpush2.msra.mxu0 0.0
        %2375 = vmatprep.subr.mxu0 0.0
        %2376 = vmatpush2.msra.mxu0 0.0
        %2377 = vmatprep.subr.mxu0 0.0
        %2378 = vmatpush2.msra.mxu0 0.0
        %2379 = vmatprep.subr.mxu0 0.0
        %2380 = vmatpush2.msra.mxu0 0.0
        %2381 = vmatprep.subr.mxu0 0.0
        %2382 = vmatpush2.msra.mxu0 0.0
        %2383 = vmatprep.subr.mxu0 0.0
        %2384 = vmatpush2.msra.mxu0 0.0
        %2385 = vmatprep.subr.mxu0 0.0
        %2386 = vmatpush2.msra.mxu0 0.0
        %2387 = vmatprep.subr.mxu0 0.0
        %2388 = vmatpush2.msra.mxu0 0.0
        %2389 = vmatprep.subr.mxu0 0.0
        %2390 = vmatpush2.msra.mxu0 0.0
        %2391 = vmatprep.subr.mxu0 0.0
        %2392 = vmatpush2.msra.mxu0 0.0
        %2393 = vmatprep.mubr.f32.mxu0 0.0
        %2394 = vmatmul.mubr.f32.gmra.mxu0 %v2231
        %v2395 = vpop.f32.mrf.mxu0
        %v2396 = vadd.f32 0.0, %v2395
        %v2397 = vpop.f32.mrf.mxu0
        %2398 = vmatprep.mubr.f32.mxu0 0.0
        %2399 = vmatmul.mubr.f32.gmra.mxu0 %v2234
        %v2400 = vpop.f32.mrf.mxu0
        %v2401 = vadd.f32 0.0, %v2400
        %v2402 = vpop.f32.mrf.mxu0
        %2403 = vmatprep.mubr.f32.mxu0 0.0
        %2404 = vmatmul.mubr.f32.gmra.mxu0 %v2237
        %v2405 = vpop.f32.mrf.mxu0
        %v2406 = vadd.f32 0.0, %v2405
        %v2407 = vpop.f32.mrf.mxu0
        %2408 = vmatprep.mubr.f32.mxu0 0.0
        %2409 = vmatmul.mubr.f32.gmra.mxu0 %v2240
        %v2410 = vpop.f32.mrf.mxu0
        %v2411 = vadd.f32 0.0, %v2410
        %v2412 = vpop.f32.mrf.mxu0
        %2413 = vmatprep.mubr.f32.mxu0 0.0
        %2414 = vmatmul.mubr.f32.gmra.mxu0 %v2243
        %v2415 = vpop.f32.mrf.mxu0
        %v2416 = vadd.f32 0.0, %v2415
        %v2417 = vpop.f32.mrf.mxu0
        %2418 = vmatprep.mubr.f32.mxu0 0.0
        %2419 = vmatmul.mubr.f32.gmra.mxu0 %v2246
        %v2420 = vpop.f32.mrf.mxu0
        %v2421 = vadd.f32 0.0, %v2420
        %v2422 = vpop.f32.mrf.mxu0
        %2423 = vmatprep.mubr.f32.mxu0 0.0
        %2424 = vmatmul.mubr.f32.gmra.mxu0 %v2249
        %v2425 = vpop.f32.mrf.mxu0
        %v2426 = vadd.f32 0.0, %v2425
        %v2427 = vpop.f32.mrf.mxu0
        %2428 = vmatprep.mubr.f32.mxu0 0.0
        %2429 = vmatmul.mubr.f32.gmra.mxu0 %v2252
        %v2430 = vpop.f32.mrf.mxu0
        %v2431 = vadd.f32 0.0, %v2430
        %v2432 = vpop.f32.mrf.mxu0
        %2433 = vmatprep.mubr.f32.mxu0 0.0
        %2434 = vmatmul.mubr.f32.gmra.mxu0 %v2255
        %v2435 = vpop.f32.mrf.mxu0
        %v2436 = vadd.f32 0.0, %v2435
        %v2437 = vpop.f32.mrf.mxu0
        %2438 = vmatprep.mubr.f32.mxu0 0.0
        %2439 = vmatmul.mubr.f32.gmra.mxu0 %v2258
        %v2440 = vpop.f32.mrf.mxu0
        %v2441 = vadd.f32 0.0, %v2440
        %v2442 = vpop.f32.mrf.mxu0
        %2443 = vmatprep.mubr.f32.mxu0 0.0
        %2444 = vmatmul.mubr.f32.gmra.mxu0 %v2261
        %v2445 = vpop.f32.mrf.mxu0
        %v2446 = vadd.f32 0.0, %v2445
        %v2447 = vpop.f32.mrf.mxu0
        %2448 = vmatprep.mubr.f32.mxu0 0.0
        %2449 = vmatmul.mubr.f32.gmra.mxu0 %v2264
        %v2450 = vpop.f32.mrf.mxu0
        %v2451 = vadd.f32 0.0, %v2450
        %v2452 = vpop.f32.mrf.mxu0
        %2453 = vmatprep.mubr.f32.mxu0 0.0
        %2454 = vmatmul.mubr.f32.gmra.mxu0 %v2267
        %v2455 = vpop.f32.mrf.mxu0
        %v2456 = vadd.f32 0.0, %v2455
        %v2457 = vpop.f32.mrf.mxu0
        %2458 = vmatprep.mubr.f32.mxu0 0.0
        %2459 = vmatmul.mubr.f32.gmra.mxu0 %v2270
        %v2460 = vpop.f32.mrf.mxu0
        %v2461 = vadd.f32 0.0, %v2460
        %v2462 = vpop.f32.mrf.mxu0
        %2463 = vmatprep.mubr.f32.mxu0 0.0
        %2464 = vmatmul.mubr.f32.gmra.mxu0 %v2273
        %v2465 = vpop.f32.mrf.mxu0
        %v2466 = vadd.f32 0.0, %v2465
        %v2467 = vpop.f32.mrf.mxu0
        %2468 = vmatprep.mubr.f32.mxu0 0.0
        %2469 = vmatmul.mubr.f32.gmra.mxu0 %v2276
        %v2470 = vpop.f32.mrf.mxu0
        %v2471 = vadd.f32 0.0, %v2470
        %v2472 = vpop.f32.mrf.mxu0
        %2473 = vmatprep.mubr.f32.mxu0 0.0
        %2474 = vmatmul.mubr.f32.gmra.mxu0 %v2279
        %v2475 = vpop.f32.mrf.mxu0
        %v2476 = vadd.f32 0.0, %v2475
        %v2477 = vpop.f32.mrf.mxu0
        %2478 = vmatprep.mubr.f32.mxu0 0.0
        %2479 = vmatmul.mubr.f32.gmra.mxu0 %v2282
        %v2480 = vpop.f32.mrf.mxu0
        %v2481 = vadd.f32 0.0, %v2480
        %v2482 = vpop.f32.mrf.mxu0
        %2483 = vmatprep.mubr.f32.mxu0 0.0
        %2484 = vmatmul.mubr.f32.gmra.mxu0 %v2285
        %v2485 = vpop.f32.mrf.mxu0
        %v2486 = vadd.f32 0.0, %v2485
        %v2487 = vpop.f32.mrf.mxu0
        %2488 = vmatprep.mubr.f32.mxu0 0.0
        %2489 = vmatmul.mubr.f32.gmra.mxu0 %v2288
        %v2490 = vpop.f32.mrf.mxu0
        %v2491 = vadd.f32 0.0, %v2490
        %v2492 = vpop.f32.mrf.mxu0
        %2493 = vmatprep.mubr.f32.mxu0 0.0
        %2494 = vmatmul.mubr.f32.gmra.mxu0 %v2291
        %v2495 = vpop.f32.mrf.mxu0
        %v2496 = vadd.f32 0.0, %v2495
        %v2497 = vpop.f32.mrf.mxu0
        %2498 = vmatprep.mubr.f32.mxu0 0.0
        %2499 = vmatmul.mubr.f32.gmra.mxu0 %v2294
        %v2500 = vpop.f32.mrf.mxu0
        %v2501 = vadd.f32 0.0, %v2500
        %v2502 = vpop.f32.mrf.mxu0
        %2503 = vmatprep.mubr.f32.mxu0 0.0
        %2504 = vmatmul.mubr.f32.gmra.mxu0 %v2297
        %v2505 = vpop.f32.mrf.mxu0
        %v2506 = vadd.f32 0.0, %v2505
        %v2507 = vpop.f32.mrf.mxu0
        %2508 = vmatprep.mubr.f32.mxu0 0.0
        %2509 = vmatmul.mubr.f32.gmra.mxu0 %v2300
        %v2510 = vpop.f32.mrf.mxu0
        %v2511 = vadd.f32 0.0, %v2510
        %v2512 = vpop.f32.mrf.mxu0
        %2513 = vmatprep.mubr.f32.mxu0 0.0
        %2514 = vmatmul.mubr.f32.gmra.mxu0 %v2303
        %v2515 = vpop.f32.mrf.mxu0
        %v2516 = vadd.f32 0.0, %v2515
        %v2517 = vpop.f32.mrf.mxu0
        %2518 = vmatprep.mubr.f32.mxu0 0.0
        %2519 = vmatmul.mubr.f32.gmra.mxu0 %v2306
        %v2520 = vpop.f32.mrf.mxu0
        %v2521 = vadd.f32 0.0, %v2520
        %v2522 = vpop.f32.mrf.mxu0
        %2523 = vmatprep.mubr.f32.mxu0 0.0
        %2524 = vmatmul.mubr.f32.gmra.mxu0 %v2309
        %v2525 = vpop.f32.mrf.mxu0
        %v2526 = vadd.f32 0.0, %v2525
        %v2527 = vpop.f32.mrf.mxu0
        %2528 = vmatprep.mubr.f32.mxu0 0.0
        %2529 = vmatmul.mubr.f32.gmra.mxu0 %v2312
        %v2530 = vpop.f32.mrf.mxu0
        %v2531 = vadd.f32 0.0, %v2530
        %v2532 = vpop.f32.mrf.mxu0
        %2533 = vmatprep.mubr.f32.mxu0 0.0
        %2534 = vmatmul.mubr.f32.gmra.mxu0 %v2315
        %v2535 = vpop.f32.mrf.mxu0
        %v2536 = vadd.f32 0.0, %v2535
        %v2537 = vpop.f32.mrf.mxu0
        %2538 = vmatprep.mubr.f32.mxu0 0.0
        %2539 = vmatmul.mubr.f32.gmra.mxu0 %v2318
        %v2540 = vpop.f32.mrf.mxu0
        %v2541 = vadd.f32 0.0, %v2540
        %v2542 = vpop.f32.mrf.mxu0
        %2543 = vmatprep.mubr.f32.mxu0 0.0
        %2544 = vmatmul.mubr.f32.gmra.mxu0 %v2321
        %v2545 = vpop.f32.mrf.mxu0
        %v2546 = vadd.f32 0.0, %v2545
        %v2547 = vpop.f32.mrf.mxu0
        %2548 = vmatprep.mubr.f32.mxu0 0.0
        %2549 = vmatmul.mubr.f32.gmra.mxu0 %v2324
        %v2550 = vpop.f32.mrf.mxu0
        %v2551 = vadd.f32 0.0, %v2550
        %v2552 = vpop.f32.mrf.mxu0
        %2553 = vdwg.mxu0
        %v2554 = vadd.f32 %v2037, %v2396
        %v2555 = vadd.f32 %v2042, %v2401
        %v2556 = vadd.f32 %v2047, %v2406
        %v2557 = vadd.f32 %v2052, %v2411
        %v2558 = vadd.f32 %v2057, %v2416
        %v2559 = vadd.f32 %v2062, %v2421
        %v2560 = vadd.f32 %v2067, %v2426
        %v2561 = vadd.f32 %v2072, %v2431
        %v2562 = vadd.f32 %v2077, %v2436
        %v2563 = vadd.f32 %v2082, %v2441
        %v2564 = vadd.f32 %v2087, %v2446
        %v2565 = vadd.f32 %v2092, %v2451
        %v2566 = vadd.f32 %v2097, %v2456
        %v2567 = vadd.f32 %v2102, %v2461
        %v2568 = vadd.f32 %v2107, %v2466
        %v2569 = vadd.f32 %v2112, %v2471
        %v2570 = vadd.f32 %v2117, %v2476
        %v2571 = vadd.f32 %v2122, %v2481
        %v2572 = vadd.f32 %v2127, %v2486
        %v2573 = vadd.f32 %v2132, %v2491
        %v2574 = vadd.f32 %v2137, %v2496
        %v2575 = vadd.f32 %v2142, %v2501
        %v2576 = vadd.f32 %v2147, %v2506
        %v2577 = vadd.f32 %v2152, %v2511
        %v2578 = vadd.f32 %v2157, %v2516
        %v2579 = vadd.f32 %v2162, %v2521
        %v2580 = vadd.f32 %v2167, %v2526
        %v2581 = vadd.f32 %v2172, %v2531
        %v2582 = vadd.f32 %v2177, %v2536
        %v2583 = vadd.f32 %v2182, %v2541
        %v2584 = vadd.f32 %v2187, %v2546
        %v2585 = vadd.f32 %v2192, %v2551
        %v2586 = vsel %vm929, %v2554, 0.0
        %v2587 = vsel %vm929, %v2555, 0.0
        %v2588 = vadd.f32 %v2586, %v2587
        %v2589 = vsel %vm929, %v2556, 0.0
        %v2590 = vadd.f32 %v2588, %v2589
        %v2591 = vsel %vm929, %v2557, 0.0
        %v2592 = vadd.f32 %v2590, %v2591
        %v2593 = vsel %vm929, %v2558, 0.0
        %v2594 = vadd.f32 %v2592, %v2593
        %v2595 = vsel %vm929, %v2559, 0.0
        %v2596 = vadd.f32 %v2594, %v2595
        %v2597 = vsel %vm929, %v2560, 0.0
        %v2598 = vadd.f32 %v2596, %v2597
        %v2599 = vsel %vm929, %v2561, 0.0
        %v2600 = vadd.f32 %v2598, %v2599
        %v2601 = vsel %vm929, %v2562, 0.0
        %v2602 = vadd.f32 %v2600, %v2601
        %v2603 = vsel %vm929, %v2563, 0.0
        %v2604 = vadd.f32 %v2602, %v2603
        %v2605 = vsel %vm929, %v2564, 0.0
        %v2606 = vadd.f32 %v2604, %v2605
        %v2607 = vsel %vm929, %v2565, 0.0
        %v2608 = vadd.f32 %v2606, %v2607
        %v2609 = vsel %vm929, %v2566, 0.0
        %v2610 = vadd.f32 %v2608, %v2609
        %v2611 = vsel %vm929, %v2567, 0.0
        %v2612 = vadd.f32 %v2610, %v2611
        %v2613 = vsel %vm929, %v2568, 0.0
        %v2614 = vadd.f32 %v2612, %v2613
        %v2615 = vsel %vm929, %v2569, 0.0
        %v2616 = vadd.f32 %v2614, %v2615
        %v2617 = vsel %vm929, %v2570, 0.0
        %v2618 = vadd.f32 %v2616, %v2617
        %v2619 = vsel %vm929, %v2571, 0.0
        %v2620 = vadd.f32 %v2618, %v2619
        %v2621 = vsel %vm929, %v2572, 0.0
        %v2622 = vadd.f32 %v2620, %v2621
        %v2623 = vsel %vm929, %v2573, 0.0
        %v2624 = vadd.f32 %v2622, %v2623
        %v2625 = vsel %vm929, %v2574, 0.0
        %v2626 = vadd.f32 %v2624, %v2625
        %v2627 = vsel %vm929, %v2575, 0.0
        %v2628 = vadd.f32 %v2626, %v2627
        %v2629 = vsel %vm929, %v2576, 0.0
        %v2630 = vadd.f32 %v2628, %v2629
        %v2631 = vsel %vm929, %v2577, 0.0
        %v2632 = vadd.f32 %v2630, %v2631
        %v2633 = vsel %vm929, %v2578, 0.0
        %v2634 = vadd.f32 %v2632, %v2633
        %v2635 = vsel %vm929, %v2579, 0.0
        %v2636 = vadd.f32 %v2634, %v2635
        %v2637 = vsel %vm929, %v2580, 0.0
        %v2638 = vadd.f32 %v2636, %v2637
        %v2639 = vsel %vm929, %v2581, 0.0
        %v2640 = vadd.f32 %v2638, %v2639
        %v2641 = vsel %vm929, %v2582, 0.0
        %v2642 = vadd.f32 %v2640, %v2641
        %v2643 = vsel %vm929, %v2583, 0.0
        %v2644 = vadd.f32 %v2642, %v2643
        %v2645 = vsel %vm929, %v2584, 0.0
        %v2646 = vadd.f32 %v2644, %v2645
        %v2647 = vsel %vm929, %v2585, 0.0
        %v2648 = vadd.f32 %v2646, %v2647
        %v2649 = vrot.slane %v2648, 4
        %v2650 = vadd.f32 %v2648, %v2649
        %v2651 = vrot.slane %v2650, 2
        %v2652 = vadd.f32 %v2650, %v2651
        %v2653 = vrot.slane %v2652, 1
        %v2654 = vadd.f32 %v2652, %v2653
        %v2655 = vadd.f32 %v2654, 0.0
        %v2656 = vmul.f32 %v2554, %v2554
        %v2657 = vmul.f32 %v2555, %v2555
        %v2658 = vmul.f32 %v2556, %v2556
        %v2659 = vmul.f32 %v2557, %v2557
        %v2660 = vmul.f32 %v2558, %v2558
        %v2661 = vmul.f32 %v2559, %v2559
        %v2662 = vmul.f32 %v2560, %v2560
        %v2663 = vmul.f32 %v2561, %v2561
        %v2664 = vmul.f32 %v2562, %v2562
        %v2665 = vmul.f32 %v2563, %v2563
        %v2666 = vmul.f32 %v2564, %v2564
        %v2667 = vmul.f32 %v2565, %v2565
        %v2668 = vmul.f32 %v2566, %v2566
        %v2669 = vmul.f32 %v2567, %v2567
        %v2670 = vmul.f32 %v2568, %v2568
        %v2671 = vmul.f32 %v2569, %v2569
        %v2672 = vmul.f32 %v2570, %v2570
        %v2673 = vmul.f32 %v2571, %v2571
        %v2674 = vmul.f32 %v2572, %v2572
        %v2675 = vmul.f32 %v2573, %v2573
        %v2676 = vmul.f32 %v2574, %v2574
        %v2677 = vmul.f32 %v2575, %v2575
        %v2678 = vmul.f32 %v2576, %v2576
        %v2679 = vmul.f32 %v2577, %v2577
        %v2680 = vmul.f32 %v2578, %v2578
        %v2681 = vmul.f32 %v2579, %v2579
        %v2682 = vmul.f32 %v2580, %v2580
        %v2683 = vmul.f32 %v2581, %v2581
        %v2684 = vmul.f32 %v2582, %v2582
        %v2685 = vmul.f32 %v2583, %v2583
        %v2686 = vmul.f32 %v2584, %v2584
        %v2687 = vmul.f32 %v2585, %v2585
        %v2688 = vsel %vm929, %v2656, 0.0
        %v2689 = vsel %vm929, %v2657, 0.0
        %v2690 = vadd.f32 %v2688, %v2689
        %v2691 = vsel %vm929, %v2658, 0.0
        %v2692 = vadd.f32 %v2690, %v2691
        %v2693 = vsel %vm929, %v2659, 0.0
        %v2694 = vadd.f32 %v2692, %v2693
        %v2695 = vsel %vm929, %v2660, 0.0
        %v2696 = vadd.f32 %v2694, %v2695
        %v2697 = vsel %vm929, %v2661, 0.0
        %v2698 = vadd.f32 %v2696, %v2697
        %v2699 = vsel %vm929, %v2662, 0.0
        %v2700 = vadd.f32 %v2698, %v2699
        %v2701 = vsel %vm929, %v2663, 0.0
        %v2702 = vadd.f32 %v2700, %v2701
        %v2703 = vsel %vm929, %v2664, 0.0
        %v2704 = vadd.f32 %v2702, %v2703
        %v2705 = vsel %vm929, %v2665, 0.0
        %v2706 = vadd.f32 %v2704, %v2705
        %v2707 = vsel %vm929, %v2666, 0.0
        %v2708 = vadd.f32 %v2706, %v2707
        %v2709 = vsel %vm929, %v2667, 0.0
        %v2710 = vadd.f32 %v2708, %v2709
        %v2711 = vsel %vm929, %v2668, 0.0
        %v2712 = vadd.f32 %v2710, %v2711
        %v2713 = vsel %vm929, %v2669, 0.0
        %v2714 = vadd.f32 %v2712, %v2713
        %v2715 = vsel %vm929, %v2670, 0.0
        %v2716 = vadd.f32 %v2714, %v2715
        %v2717 = vsel %vm929, %v2671, 0.0
        %v2718 = vadd.f32 %v2716, %v2717
        %v2719 = vsel %vm929, %v2672, 0.0
        %v2720 = vadd.f32 %v2718, %v2719
        %v2721 = vsel %vm929, %v2673, 0.0
        %v2722 = vadd.f32 %v2720, %v2721
        %v2723 = vsel %vm929, %v2674, 0.0
        %v2724 = vadd.f32 %v2722, %v2723
        %v2725 = vsel %vm929, %v2675, 0.0
        %v2726 = vadd.f32 %v2724, %v2725
        %v2727 = vsel %vm929, %v2676, 0.0
        %v2728 = vadd.f32 %v2726, %v2727
        %v2729 = vsel %vm929, %v2677, 0.0
        %v2730 = vadd.f32 %v2728, %v2729
        %v2731 = vsel %vm929, %v2678, 0.0
        %v2732 = vadd.f32 %v2730, %v2731
        %v2733 = vsel %vm929, %v2679, 0.0
        %v2734 = vadd.f32 %v2732, %v2733
        %v2735 = vsel %vm929, %v2680, 0.0
        %v2736 = vadd.f32 %v2734, %v2735
        %v2737 = vsel %vm929, %v2681, 0.0
        %v2738 = vadd.f32 %v2736, %v2737
        %v2739 = vsel %vm929, %v2682, 0.0
        %v2740 = vadd.f32 %v2738, %v2739
        %v2741 = vsel %vm929, %v2683, 0.0
        %v2742 = vadd.f32 %v2740, %v2741
        %v2743 = vsel %vm929, %v2684, 0.0
        %v2744 = vadd.f32 %v2742, %v2743
        %v2745 = vsel %vm929, %v2685, 0.0
        %v2746 = vadd.f32 %v2744, %v2745
        %v2747 = vsel %vm929, %v2686, 0.0
        %v2748 = vadd.f32 %v2746, %v2747
        %v2749 = vsel %vm929, %v2687, 0.0
        %v2750 = vadd.f32 %v2748, %v2749
        %v2751 = vrot.slane %v2750, 4
        %v2752 = vadd.f32 %v2750, %v2751
        %v2753 = vrot.slane %v2752, 2
        %v2754 = vadd.f32 %v2752, %v2753
        %v2755 = vrot.slane %v2754, 1
        %v2756 = vadd.f32 %v2754, %v2755
        %v2757 = vadd.f32 %v2756, 0.0
        %2758 = vst.msk [vmem:[%s181] sm:$0xff] %vm929, %v2554
        %2759 = vst.msk [vmem:[%s181 + $0x8] sm:$0xff] %vm929, %v2555
        %2760 = vst.msk [vmem:[%s181 + $0x10] sm:$0xff] %vm929, %v2556
        %2761 = vst.msk [vmem:[%s181 + $0x18] sm:$0xff] %vm929, %v2557
        %2762 = vst.msk [vmem:[%s181 + $0x20] sm:$0xff] %vm929, %v2558
        %2763 = vst.msk [vmem:[%s181 + $0x28] sm:$0xff] %vm929, %v2559
        %2764 = vst.msk [vmem:[%s181 + $0x30] sm:$0xff] %vm929, %v2560
        %2765 = vst.msk [vmem:[%s181 + $0x38] sm:$0xff] %vm929, %v2561
        %2766 = vst.msk [vmem:[%s181 + $0x40] sm:$0xff] %vm929, %v2562
        %2767 = vst.msk [vmem:[%s181 + $0x48] sm:$0xff] %vm929, %v2563
        %2768 = vst.msk [vmem:[%s181 + $0x50] sm:$0xff] %vm929, %v2564
        %2769 = vst.msk [vmem:[%s181 + $0x58] sm:$0xff] %vm929, %v2565
        %2770 = vst.msk [vmem:[%s181 + $0x60] sm:$0xff] %vm929, %v2566
        %2771 = vst.msk [vmem:[%s181 + $0x68] sm:$0xff] %vm929, %v2567
        %2772 = vst.msk [vmem:[%s181 + $0x70] sm:$0xff] %vm929, %v2568
        %2773 = vst.msk [vmem:[%s181 + $0x78] sm:$0xff] %vm929, %v2569
        %2774 = vst.msk [vmem:[%s181 + $0x80] sm:$0xff] %vm929, %v2570
        %2775 = vst.msk [vmem:[%s181 + $0x88] sm:$0xff] %vm929, %v2571
        %2776 = vst.msk [vmem:[%s181 + $0x90] sm:$0xff] %vm929, %v2572
        %2777 = vst.msk [vmem:[%s181 + $0x98] sm:$0xff] %vm929, %v2573
        %2778 = vst.msk [vmem:[%s181 + $0xa0] sm:$0xff] %vm929, %v2574
        %2779 = vst.msk [vmem:[%s181 + $0xa8] sm:$0xff] %vm929, %v2575
        %2780 = vst.msk [vmem:[%s181 + $0xb0] sm:$0xff] %vm929, %v2576
        %2781 = vst.msk [vmem:[%s181 + $0xb8] sm:$0xff] %vm929, %v2577
        %2782 = vst.msk [vmem:[%s181 + $0xc0] sm:$0xff] %vm929, %v2578
        %2783 = vst.msk [vmem:[%s181 + $0xc8] sm:$0xff] %vm929, %v2579
        %2784 = vst.msk [vmem:[%s181 + $0xd0] sm:$0xff] %vm929, %v2580
        %2785 = vst.msk [vmem:[%s181 + $0xd8] sm:$0xff] %vm929, %v2581
        %2786 = vst.msk [vmem:[%s181 + $0xe0] sm:$0xff] %vm929, %v2582
        %2787 = vst.msk [vmem:[%s181 + $0xe8] sm:$0xff] %vm929, %v2583
        %2788 = vst.msk [vmem:[%s181 + $0xf0] sm:$0xff] %vm929, %v2584
        %2789 = vst.msk [vmem:[%s181 + $0xf8] sm:$0xff] %vm929, %v2585
        %v2790 = vsel %vm704, %v2655, %v2757
        %vm2791 = vcmask 25600
        %2792 = vst.msk [vmem:[%s171] sm:$0x3] %vm2791, %v2790
        %p2793 = scmp.lt.s32.totalorder %s18, 1
        %s2794 = scalar_select %p2793, %s18, 1
        %s2795 = smul.addr %s2794, 32
        %s2796 = smul.addr %s2795, 8
        %s2797 = scalar_lea.vmem %s2, %s2796
        %s2798 = sand.u32 %s99, 1
        %s2799 = scalar_lea.sflag [#allocation4], %s2798
        %s2800 = sand.u32 %s99, 1
        %s2801 = smul.addr %s2800, 2
        %s2802 = scalar_lea.vmem [#allocation3], %s2801
        // Predicated region
        $region29: #{tpu_custom_call.1} parent=27 // pred_check
          %p2803 = pneg %p83
        $region30: #{tpu_custom_call.1} parent=27 // pred_check_branch
          %2805 = sbr.rel (%p2803) target = $region32
        $region31: #{tpu_custom_call.1} parent=27 // pred_region
          _
        $region32: #{tpu_custom_call.1} parent=27 // pred_fallthru
          _
        // Predicated region
        $region33: #{tpu_custom_call.1} parent=27 // pred_check
          %p2806 = pneg %p109
        $region34: #{tpu_custom_call.1} parent=27 // pred_check_branch
          %2808 = sbr.rel (%p2806) target = $region36
        $region35: #{tpu_custom_call.1} parent=27 // pred_region
          %s2810 = ssub.s32 32, 32
          %2811 = vsyncadd %s2799, %s2810
          %s2812 = smul.addr %s18, 32
          %s2813 = scalar_lea.hbm %s3, %s2812
          %s2815 = sshll.u32 %s2802, 4
          %s2816 = int_to_ptr.vmem [resolvable:$true] %s2815
          %2818 = dma.vmem_to_hbm [thread:$0]  %s2816, 32, %s2813, %s2799
        $region36: #{tpu_custom_call.1} parent=27 // pred_fallthru
          _
      $region28: #{tpu_custom_call.1} parent=5 // pred_fallthru
        _
      %p2819 = scmp.le.s32.totalorder 2, %s13
      // Predicated region
      $region37: #{tpu_custom_call.1} parent=5 // pred_check
        %p2820 = pneg %p2819
      $region38: #{tpu_custom_call.1} parent=5 // pred_check_branch
        %2822 = sbr.rel (%p2820) target = $region40
      $region39: #{tpu_custom_call.1} parent=5 // pred_region
        %s2823 = ssub.s32 %s13, 2
        // Predicated region
        $region41: #{tpu_custom_call.1} parent=39 // pred_check
          %p2824 = pneg %p89
        $region42: #{tpu_custom_call.1} parent=39 // pred_check_branch
          %2826 = sbr.rel (%p2824) target = $region44
        $region43: #{tpu_custom_call.1} parent=39 // pred_region
          %p2827 = scmp.lt.s32.totalorder %s19, 1
          %s2828 = scalar_select %p2827, %s19, 1
          %s2829 = smul.addr %s2828, 32
          %s2830 = smul.addr %s2829, 8
          %s2831 = scalar_lea.vmem %s2, %s2830
        $region44: #{tpu_custom_call.1} parent=39 // pred_fallthru
          _
        // Predicated region
        $region45: #{tpu_custom_call.1} parent=39 // pred_check
          %p2832 = pneg %p115
        $region46: #{tpu_custom_call.1} parent=39 // pred_check_branch
          %2834 = sbr.rel (%p2832) target = $region48
        $region47: #{tpu_custom_call.1} parent=39 // pred_region
          %s2835 = sand.u32 %s100, 1
          %s2836 = scalar_lea.sflag [#allocation4], %s2835
          %s2837 = sand.u32 %s100, 1
          %s2838 = smul.addr %s2837, 2
          %s2839 = scalar_lea.vmem [#allocation3], %s2838
          %2840 = dma.done %s2836, 32
        $region48: #{tpu_custom_call.1} parent=39 // pred_fallthru
          _
      $region40: #{tpu_custom_call.1} parent=5 // pred_fallthru
        _
    $region6: #{tpu_custom_call.1} parent=1 // loop_footer
      %s17 = sadd.s32 1, %s13
    $region7: #{tpu_custom_call.1} parent=1 // loop_footer_branch
      %12 = sbr.rel target = $region3
    $region8: #{tpu_custom_call.1} parent=1 // loop_exit
      _
    %2841 = vsyncpa [#allocation4], 1
    %s2842 = scalar_lea.sflag [#allocation4], 1
    %2843 = vsyncpa %s2842, 1

</llo_original>
